<compile_context>
chip_gen: v6e
topology: v6e:2x2x1
jax: 0.10.0
libtpu: 0.0.40
codegen_flags: <defaults>
</compile_context>

<pallas_src>
import functools

import jax
import jax.numpy as jnp
from jax.experimental import pallas as pl
from jax.experimental.pallas import tpu as pltpu


# ----------------------------------------------------------------------------
# Parameter packing: one contiguous f32 buffer, 8-row-aligned segments
# ----------------------------------------------------------------------------
def _rup(x, m):
    return ((x + m - 1) // m) * m


def build_layout(E, H, C):
    entries = [
        ("Wx_t", E, 2 * H), ("Wx_p", E, 2 * H),
        ("Wh_both", 2 * H, 4 * H),
        ("aW1", H, H), ("fW1", 2 * H, H), ("fW2", H, C),
        ("b_t", 1, 2 * H), ("b_p", 1, 2 * H),
        ("ab1", 1, H), ("aW2r", 1, H), ("ab2", 1, 1),
        ("fb1", 1, H), ("fb2", 1, C),
    ]
    layout, row = {}, 0
    for name, nr, nc in entries:
        layout[name] = (row, nr, nc)
        row += _rup(nr, 8)
    total_rows = _rup(row, 8)
    lane = _rup(max(nc for _, _, nc in entries), 128)
    return layout, total_rows, lane


def pack_params(p, layout, total_rows, lane, E):
    H = p["aW1"].shape[0]
    zH = jnp.zeros((H, H), jnp.float32)
    # Block-diagonal recurrence weight.
    #   rows   : [ h_t (0:H) ; h_p (H:2H) ]
    #   columns: [ z_t | z_p | g_t | g_p ]
    Wh_both = jnp.concatenate([
        jnp.concatenate([p["tWz"][E:], zH, p["tWo"][E:], zH], axis=1),
        jnp.concatenate([zH, p["pWz"][E:], zH, p["pWo"][E:]], axis=1),
    ], axis=0)                                                       # [2H, 4H]

    vals = {
        # x-dependent gate weights, gate-fused along lanes: [update | output]
        "Wx_t": jnp.concatenate([p["tWz"][:E], p["tWo"][:E]], axis=1),
        "Wx_p": jnp.concatenate([p["pWz"][:E], p["pWo"][:E]], axis=1),
        "Wh_both": Wh_both,
        "b_t": jnp.concatenate([p["tbz"], p["tbo"]], axis=1),
        "b_p": jnp.concatenate([p["pbz"], p["pbo"]], axis=1),
        "aW1": p["aW1"], "ab1": p["ab1"],
        "aW2r": p["aW2"].T, "ab2": p["ab2"],
        "fW1": p["fW1"], "fb1": p["fb1"],
        "fW2": p["fW2"], "fb2": p["fb2"],
    }
    packed = jnp.zeros((total_rows, lane), jnp.float32)
    for name, (r0, nr, nc) in layout.items():
        packed = packed.at[r0:r0 + nr, 0:nc].set(vals[name].astype(jnp.float32))
    return packed


# ----------------------------------------------------------------------------
# Pallas kernel: whole forward pass (fused MinGRU recurrences, attention, MLP)
# ----------------------------------------------------------------------------
def stance_kernel(text_ref, topic_ref, params_ref,
                  logits_ref, attnw_ref,
                  *, layout, batch, hidden):
    B, H = batch, hidden
    S_t = text_ref.shape[0] // B
    S_p = topic_ref.shape[0] // B
    S_max = max(S_t, S_p)
    f32 = jnp.float32

    def ld(name):
        r0, nr, nc = layout[name]
        return params_ref[r0:r0 + nr, 0:nc]

    # ---- hoisted parameter loads (read exactly once) -------------------------
    Wx_t, b_t = ld("Wx_t"), ld("b_t")
    Wx_p, b_p = ld("Wx_p"), ld("b_p")
    Wh_both = ld("Wh_both")
    aW1, ab1 = ld("aW1"), ld("ab1")
    aW2r, ab2 = ld("aW2r"), ld("ab2")
    fW1, fb1 = ld("fW1"), ld("fb1")
    fW2, fb2 = ld("fW2"), ld("fb2")

    # ---- x-dependent gate inputs: hoisted & pre-packed OFF the serial chain --
    # one [S*B,E]@[E,2H] matmul per sequence; biases folded in exactly once;
    # then packed per timestep into the fused [z_t | z_p | g_t | g_p] layout.
    xproj_t = jnp.dot(text_ref[...], Wx_t, preferred_element_type=f32) + b_t   # [S_t*B, 2H]
    xproj_p = jnp.dot(topic_ref[...], Wx_p, preferred_element_type=f32) + b_p  # [S_p*B, 2H]

    zeros_bh = jnp.zeros((B, H), f32)
    xpre_steps = []
    for t in range(S_max):
        if t < S_t:
            xt = xproj_t[t * B:(t + 1) * B, :]
            zt, gt = xt[:, :H], xt[:, H:]
        else:
            zt, gt = zeros_bh, zeros_bh
        if t < S_p:
            xp = xproj_p[t * B:(t + 1) * B, :]
            zp, gp = xp[:, :H], xp[:, H:]
        else:
            zp, gp = zeros_bh, zeros_bh
        xpre_steps.append(jnp.concatenate([zt, zp, gt, gp], axis=-1))           # [B, 4H]

    # lane mask selecting the text half of the fused state (lanes [0, H))
    if S_t != S_p:
        lane_idx = jax.lax.broadcasted_iota(jnp.int32, (B, 2 * H), 1)
        text_half = lane_idx < H

    # ---- fused recurrence: ONE MXU push + one sigmoid + one tanh per step ----
    h_both = jnp.zeros((B, 2 * H), f32)                    # [h_t | h_p]
    text_hs = []
    for t in range(S_max):
        pre = xpre_steps[t] + jnp.dot(h_both, Wh_both,
                                      preferred_element_type=f32)  # [B, 4H]
        z = jax.nn.sigmoid(pre[:, :2 * H])                 # [z_t | z_p]
        g = jnp.tanh(pre[:, 2 * H:])                       # [g_t | g_p]
        new_h = h_both + z * (g - h_both)                  # == (1-z)*h + z*g
        if t < S_t and t < S_p:
            h_both = new_h
        elif t < S_t:                                      # topic done: freeze h_p
            h_both = jnp.where(text_half, new_h, h_both)
        else:                                              # text done: freeze h_t
            h_both = jnp.where(text_half, h_both, new_h)
        if t < S_t:
            text_hs.append(h_both[:, :H])

    # ---- attention, batched over all timesteps (off the chain) ---------------
    flat_out = jnp.concatenate(text_hs, axis=0)                        # [S_t*B, H]
    u = jnp.tanh(jnp.dot(flat_out, aW1, preferred_element_type=f32) + ab1)
    s_flat = jnp.sum(u * aW2r, axis=-1, keepdims=True) + ab2           # [S_t*B, 1]

    # scores laid out [B, S_t]: batch in sublanes, time in lanes
    scores_bt = jnp.concatenate(
        [s_flat[t * B:(t + 1) * B, :] for t in range(S_t)], axis=-1)   # [B, S_t]
    m = jnp.max(scores_bt, axis=-1, keepdims=True)
    e = jnp.exp(scores_bt - m)
    w_bt = e / jnp.sum(e, axis=-1, keepdims=True)                      # [B, S_t]
    attnw_ref[...] = w_bt                                              # lane-dense output

    # register-resident weighted sum over time (no scratch round-trip)
    context = jnp.zeros((B, H), f32)
    for t in range(S_t):
        context = context + w_bt[:, t:t + 1] * text_hs[t]

    # ---- head: dropout(identity) -> relu(fc1) -> dropout -> fc2 --------------
    h_topic = h_both[:, H:]                                            # final topic hidden
    combined = jnp.concatenate([context, h_topic], axis=-1)            # [B, 2H]
    h1 = jnp.maximum(
        jnp.dot(combined, fW1, preferred_element_type=f32) + fb1, 0.0)
    logits_ref[...] = jnp.dot(h1, fW2, preferred_element_type=f32) + fb2


# ----------------------------------------------------------------------------
# Wrapper: embedding lookup (glue) + pallas_call
# ----------------------------------------------------------------------------
def make_stance_forward(E, H, C):
    layout, total_rows, lane = build_layout(E, H, C)

    @jax.jit
    def forward(text_ids, topic_ids, emb, packed):
        te = jnp.take(emb, text_ids, axis=0).astype(jnp.float32)      # [B, S_t, E]
        pe = jnp.take(emb, topic_ids, axis=0).astype(jnp.float32)     # [B, S_p, E]
        B, S_t, _ = te.shape
        S_p = pe.shape[1]

        # time-major, flattened to 2D so all kernel matmuls stay rank-2
        text2 = jnp.transpose(te, (1, 0, 2)).reshape(S_t * B, E)
        topic2 = jnp.transpose(pe, (1, 0, 2)).reshape(S_p * B, E)

        kernel = functools.partial(stance_kernel, layout=layout,
                                   batch=B, hidden=H)
        vmem = pl.BlockSpec(memory_space=pltpu.MemorySpace.VMEM)

        logits, attnw_bt = pl.pallas_call(
            kernel,
            out_shape=(
                jax.ShapeDtypeStruct((B, C), jnp.float32),
                jax.ShapeDtypeStruct((B, S_t), jnp.float32),   # lane-dense weights
            ),
            in_specs=[vmem, vmem, vmem],
            out_specs=(vmem, vmem),
        )(text2, topic2, packed)

        attention_weights = attnw_bt[:, :, None]                       # [B, S_t, 1]
        return logits, attention_weights

    def pack(p):
        return pack_params(p, layout, total_rows, lane, E)

    return forward, pack


# ----------------------------------------------------------------------------
# Pure-JAX reference (mirrors the PyTorch module, eval mode)
# ----------------------------------------------------------------------------
def reference_forward(text_ids, topic_ids, p):
    emb = p["emb"]
    te = emb[text_ids]
    pe = emb[topic_ids]

    def run_gru(xs, Wz, bz, Wo, bo):
        B, S, _ = xs.shape
        H = Wz.shape[1]
        h = jnp.zeros((B, H), jnp.float32)
        outs = []
        for t in range(S):
            comb = jnp.concatenate([xs[:, t, :], h], axis=1)
            z = jax.nn.sigmoid(comb @ Wz + bz)
            ht = jnp.tanh(comb @ Wo + bo)
            h = (1.0 - z) * h + z * ht
            outs.append(h)
        return jnp.stack(outs, axis=1), h

    text_out, _ = run_gru(te, p["tWz"], p["tbz"], p["tWo"], p["tbo"])
    _, topic_h = run_gru(pe, p["pWz"], p["pbz"], p["pWo"], p["pbo"])

    sc = jnp.tanh(text_out @ p["aW1"] + p["ab1"]) @ p["aW2"] + p["ab2"]
    w = jax.nn.softmax(sc, axis=1)
    ctx = jnp.sum(w * text_out, axis=1)
    comb = jnp.concatenate([ctx, topic_h], axis=1)
    h1 = jax.nn.relu(comb @ p["fW1"] + p["fb1"])
    logits = h1 @ p["fW2"] + p["fb2"]
    return logits, w


# ----------------------------------------------------------------------------
# Deterministic parameter init (synthetic; mirrors module __init__ shapes)
# ----------------------------------------------------------------------------
def init_params(key, vocab, E, H, C):
    ks = jax.random.split(key, 16)

    def xavier(k, shape):  # [in, out]
        b = (6.0 / (shape[0] + shape[1])) ** 0.5
        return jax.random.uniform(k, shape, jnp.float32, -b, b)

    def lin(k, shape, fan_in):
        b = 1.0 / (fan_in ** 0.5)
        return jax.random.uniform(k, shape, jnp.float32, -b, b)

    emb = jax.random.normal(ks[0], (vocab, E), jnp.float32)
    emb = emb.at[0].set(0.0)  # padding_idx=0

    return {
        "emb": emb,
        # MinGRU cells: xavier_uniform weights, zero biases
        "tWz": xavier(ks[1], (E + H, H)), "tbz": jnp.zeros((1, H), jnp.float32),
        "tWo": xavier(ks[2], (E + H, H)), "tbo": jnp.zeros((1, H), jnp.float32),
        "pWz": xavier(ks[3], (E + H, H)), "pbz": jnp.zeros((1, H), jnp.float32),
        "pWo": xavier(ks[4], (E + H, H)), "pbo": jnp.zeros((1, H), jnp.float32),
        # attention
        "aW1": lin(ks[5], (H, H), H), "ab1": lin(ks[6], (1, H), H),
        "aW2": lin(ks[7], (H, 1), H), "ab2": lin(ks[8], (1, 1), H),
        # classifier head
        "fW1": lin(ks[9], (2 * H, H), 2 * H), "fb1": lin(ks[10], (1, H), 2 * H),
        "fW2": lin(ks[11], (H, C), H), "fb2": lin(ks[12], (1, C), H),
    }


if __name__ == "__main__":
    VOCAB, E, H, C = 50, 32, 32, 3
    B, S_TEXT, S_TOPIC = 2, 8, 5

    key = jax.random.PRNGKey(0)
    kp, kt, kq = jax.random.split(key, 3)
    params = init_params(kp, VOCAB, E, H, C)

    text_ids = jax.random.randint(kt, (B, S_TEXT), 0, VOCAB, dtype=jnp.int32)
    topic_ids = jax.random.randint(kq, (B, S_TOPIC), 0, VOCAB, dtype=jnp.int32)

    forward, pack = make_stance_forward(E, H, C)
    packed = pack(params)

    logits, attn_w = forward(text_ids, topic_ids, params["emb"], packed)
    jax.block_until_ready((logits, attn_w))

    ref_logits, ref_attn = reference_forward(text_ids, topic_ids, params)
    assert logits.shape == (B, C) and attn_w.shape == (B, S_TEXT, 1)
    assert jnp.allclose(logits, ref_logits, atol=1e-4, rtol=1e-4)
    assert jnp.allclose(attn_w, ref_attn, atol=1e-5, rtol=1e-4)

    print("KERNEL_OK")
</pallas_src>

<mosaic_0001>
module attributes {stable_mosaic.version = 11 : i64} {
  func.func @stance_kernel(%arg0: memref<16x32xf32, #tpu.memory_space<vmem>>, %arg1: memref<10x32xf32, #tpu.memory_space<vmem>>, %arg2: memref<312x128xf32, #tpu.memory_space<vmem>>, %arg3: memref<2x3xf32, #tpu.memory_space<vmem>>, %arg4: memref<2x8xf32, #tpu.memory_space<vmem>>) attributes {dimension_semantics = [], scalar_prefetch = 0 : i64, scratch_operands = 0 : i64, tpu.core_type = #tpu.core_type<tc>} {
    %c0 = arith.constant 0 : index
    %c0_0 = arith.constant 0 : index
    %0 = vector.load %arg2[%c0, %c0_0] : memref<312x128xf32, #tpu.memory_space<vmem>>, vector<32x64xf32>
    %c256 = arith.constant 256 : index
    %c0_1 = arith.constant 0 : index
    %1 = vector.load %arg2[%c256, %c0_1] : memref<312x128xf32, #tpu.memory_space<vmem>>, vector<1x64xf32>
    %c32 = arith.constant 32 : index
    %c0_2 = arith.constant 0 : index
    %2 = vector.load %arg2[%c32, %c0_2] : memref<312x128xf32, #tpu.memory_space<vmem>>, vector<32x64xf32>
    %c264 = arith.constant 264 : index
    %c0_3 = arith.constant 0 : index
    %3 = vector.load %arg2[%c264, %c0_3] : memref<312x128xf32, #tpu.memory_space<vmem>>, vector<1x64xf32>
    %c64 = arith.constant 64 : index
    %c0_4 = arith.constant 0 : index
    %4 = vector.load %arg2[%c64, %c0_4] : memref<312x128xf32, #tpu.memory_space<vmem>>, vector<64x128xf32>
    %c128 = arith.constant 128 : index
    %c0_5 = arith.constant 0 : index
    %5 = vector.load %arg2[%c128, %c0_5] : memref<312x128xf32, #tpu.memory_space<vmem>>, vector<32x32xf32>
    %c272 = arith.constant 272 : index
    %c0_6 = arith.constant 0 : index
    %6 = vector.load %arg2[%c272, %c0_6] : memref<312x128xf32, #tpu.memory_space<vmem>>, vector<1x32xf32>
    %c280 = arith.constant 280 : index
    %c0_7 = arith.constant 0 : index
    %7 = vector.load %arg2[%c280, %c0_7] : memref<312x128xf32, #tpu.memory_space<vmem>>, vector<1x32xf32>
    %c288 = arith.constant 288 : index
    %c0_8 = arith.constant 0 : index
    %8 = vector.load %arg2[%c288, %c0_8] : memref<312x128xf32, #tpu.memory_space<vmem>>, vector<1x1xf32>
    %c160 = arith.constant 160 : index
    %c0_9 = arith.constant 0 : index
    %9 = vector.load %arg2[%c160, %c0_9] : memref<312x128xf32, #tpu.memory_space<vmem>>, vector<64x32xf32>
    %c296 = arith.constant 296 : index
    %c0_10 = arith.constant 0 : index
    %10 = vector.load %arg2[%c296, %c0_10] : memref<312x128xf32, #tpu.memory_space<vmem>>, vector<1x32xf32>
    %c224 = arith.constant 224 : index
    %c0_11 = arith.constant 0 : index
    %11 = vector.load %arg2[%c224, %c0_11] : memref<312x128xf32, #tpu.memory_space<vmem>>, vector<32x3xf32>
    %c304 = arith.constant 304 : index
    %c0_12 = arith.constant 0 : index
    %12 = vector.load %arg2[%c304, %c0_12] : memref<312x128xf32, #tpu.memory_space<vmem>>, vector<1x3xf32>
    %c0_13 = arith.constant 0 : index
    %c0_14 = arith.constant 0 : index
    %13 = vector.load %arg0[%c0_13, %c0_14] : memref<16x32xf32, #tpu.memory_space<vmem>>, vector<16x32xf32>
    %cst = arith.constant dense<0.000000e+00> : vector<16x64xf32>
    %14 = tpu.matmul %13, %0, %cst {dimension_numbers = #tpu.dot_dimension_numbers<[1], [0], [0], [1], [0, 0, 1, 1], [], []>} : vector<16x32xf32>, vector<32x64xf32>, vector<16x64xf32> -> vector<16x64xf32>
    %15 = vector.broadcast %1 : vector<1x64xf32> to vector<16x64xf32>
    %16 = arith.addf %14, %15 : vector<16x64xf32>
    %c0_15 = arith.constant 0 : index
    %c0_16 = arith.constant 0 : index
    %17 = vector.load %arg1[%c0_15, %c0_16] : memref<10x32xf32, #tpu.memory_space<vmem>>, vector<10x32xf32>
    %cst_17 = arith.constant dense<0.000000e+00> : vector<10x64xf32>
    %18 = tpu.matmul %17, %2, %cst_17 {dimension_numbers = #tpu.dot_dimension_numbers<[1], [0], [0], [1], [0, 0, 1, 1], [], []>} : vector<10x32xf32>, vector<32x64xf32>, vector<10x64xf32> -> vector<10x64xf32>
    %19 = vector.broadcast %3 : vector<1x64xf32> to vector<10x64xf32>
    %20 = arith.addf %18, %19 : vector<10x64xf32>
    %cst_18 = arith.constant 0.000000e+00 : f32
    %21 = vector.broadcast %cst_18 : f32 to vector<2x32xf32>
    %22 = vector.extract_strided_slice %16 {offsets = [0, 0], sizes = [2, 64], strides = [1, 1]} : vector<16x64xf32> to vector<2x64xf32>
    %23 = vector.extract_strided_slice %22 {offsets = [0, 0], sizes = [2, 32], strides = [1, 1]} : vector<2x64xf32> to vector<2x32xf32>
    %24 = vector.extract_strided_slice %22 {offsets = [0, 32], sizes = [2, 32], strides = [1, 1]} : vector<2x64xf32> to vector<2x32xf32>
    %25 = vector.extract_strided_slice %20 {offsets = [0, 0], sizes = [2, 64], strides = [1, 1]} : vector<10x64xf32> to vector<2x64xf32>
    %26 = vector.extract_strided_slice %25 {offsets = [0, 0], sizes = [2, 32], strides = [1, 1]} : vector<2x64xf32> to vector<2x32xf32>
    %27 = vector.extract_strided_slice %25 {offsets = [0, 32], sizes = [2, 32], strides = [1, 1]} : vector<2x64xf32> to vector<2x32xf32>
    %28 = tpu.concatenate %23, %26, %24, %27 in 1 : vector<2x32xf32>, vector<2x32xf32>, vector<2x32xf32>, vector<2x32xf32> -> vector<2x128xf32>
    %29 = vector.extract_strided_slice %16 {offsets = [2, 0], sizes = [2, 64], strides = [1, 1]} : vector<16x64xf32> to vector<2x64xf32>
    %30 = vector.extract_strided_slice %29 {offsets = [0, 0], sizes = [2, 32], strides = [1, 1]} : vector<2x64xf32> to vector<2x32xf32>
    %31 = vector.extract_strided_slice %29 {offsets = [0, 32], sizes = [2, 32], strides = [1, 1]} : vector<2x64xf32> to vector<2x32xf32>
    %32 = vector.extract_strided_slice %20 {offsets = [2, 0], sizes = [2, 64], strides = [1, 1]} : vector<10x64xf32> to vector<2x64xf32>
    %33 = vector.extract_strided_slice %32 {offsets = [0, 0], sizes = [2, 32], strides = [1, 1]} : vector<2x64xf32> to vector<2x32xf32>
    %34 = vector.extract_strided_slice %32 {offsets = [0, 32], sizes = [2, 32], strides = [1, 1]} : vector<2x64xf32> to vector<2x32xf32>
    %35 = tpu.concatenate %30, %33, %31, %34 in 1 : vector<2x32xf32>, vector<2x32xf32>, vector<2x32xf32>, vector<2x32xf32> -> vector<2x128xf32>
    %36 = vector.extract_strided_slice %16 {offsets = [4, 0], sizes = [2, 64], strides = [1, 1]} : vector<16x64xf32> to vector<2x64xf32>
    %37 = vector.extract_strided_slice %36 {offsets = [0, 0], sizes = [2, 32], strides = [1, 1]} : vector<2x64xf32> to vector<2x32xf32>
    %38 = vector.extract_strided_slice %36 {offsets = [0, 32], sizes = [2, 32], strides = [1, 1]} : vector<2x64xf32> to vector<2x32xf32>
    %39 = vector.extract_strided_slice %20 {offsets = [4, 0], sizes = [2, 64], strides = [1, 1]} : vector<10x64xf32> to vector<2x64xf32>
    %40 = vector.extract_strided_slice %39 {offsets = [0, 0], sizes = [2, 32], strides = [1, 1]} : vector<2x64xf32> to vector<2x32xf32>
    %41 = vector.extract_strided_slice %39 {offsets = [0, 32], sizes = [2, 32], strides = [1, 1]} : vector<2x64xf32> to vector<2x32xf32>
    %42 = tpu.concatenate %37, %40, %38, %41 in 1 : vector<2x32xf32>, vector<2x32xf32>, vector<2x32xf32>, vector<2x32xf32> -> vector<2x128xf32>
    %43 = vector.extract_strided_slice %16 {offsets = [6, 0], sizes = [2, 64], strides = [1, 1]} : vector<16x64xf32> to vector<2x64xf32>
    %44 = vector.extract_strided_slice %43 {offsets = [0, 0], sizes = [2, 32], strides = [1, 1]} : vector<2x64xf32> to vector<2x32xf32>
    %45 = vector.extract_strided_slice %43 {offsets = [0, 32], sizes = [2, 32], strides = [1, 1]} : vector<2x64xf32> to vector<2x32xf32>
    %46 = vector.extract_strided_slice %20 {offsets = [6, 0], sizes = [2, 64], strides = [1, 1]} : vector<10x64xf32> to vector<2x64xf32>
    %47 = vector.extract_strided_slice %46 {offsets = [0, 0], sizes = [2, 32], strides = [1, 1]} : vector<2x64xf32> to vector<2x32xf32>
    %48 = vector.extract_strided_slice %46 {offsets = [0, 32], sizes = [2, 32], strides = [1, 1]} : vector<2x64xf32> to vector<2x32xf32>
    %49 = tpu.concatenate %44, %47, %45, %48 in 1 : vector<2x32xf32>, vector<2x32xf32>, vector<2x32xf32>, vector<2x32xf32> -> vector<2x128xf32>
    %50 = vector.extract_strided_slice %16 {offsets = [8, 0], sizes = [2, 64], strides = [1, 1]} : vector<16x64xf32> to vector<2x64xf32>
    %51 = vector.extract_strided_slice %50 {offsets = [0, 0], sizes = [2, 32], strides = [1, 1]} : vector<2x64xf32> to vector<2x32xf32>
    %52 = vector.extract_strided_slice %50 {offsets = [0, 32], sizes = [2, 32], strides = [1, 1]} : vector<2x64xf32> to vector<2x32xf32>
    %53 = vector.extract_strided_slice %20 {offsets = [8, 0], sizes = [2, 64], strides = [1, 1]} : vector<10x64xf32> to vector<2x64xf32>
    %54 = vector.extract_strided_slice %53 {offsets = [0, 0], sizes = [2, 32], strides = [1, 1]} : vector<2x64xf32> to vector<2x32xf32>
    %55 = vector.extract_strided_slice %53 {offsets = [0, 32], sizes = [2, 32], strides = [1, 1]} : vector<2x64xf32> to vector<2x32xf32>
    %56 = tpu.concatenate %51, %54, %52, %55 in 1 : vector<2x32xf32>, vector<2x32xf32>, vector<2x32xf32>, vector<2x32xf32> -> vector<2x128xf32>
    %57 = vector.extract_strided_slice %16 {offsets = [10, 0], sizes = [2, 64], strides = [1, 1]} : vector<16x64xf32> to vector<2x64xf32>
    %58 = vector.extract_strided_slice %57 {offsets = [0, 0], sizes = [2, 32], strides = [1, 1]} : vector<2x64xf32> to vector<2x32xf32>
    %59 = vector.extract_strided_slice %57 {offsets = [0, 32], sizes = [2, 32], strides = [1, 1]} : vector<2x64xf32> to vector<2x32xf32>
    %60 = tpu.concatenate %58, %21, %59, %21 in 1 : vector<2x32xf32>, vector<2x32xf32>, vector<2x32xf32>, vector<2x32xf32> -> vector<2x128xf32>
    %61 = vector.extract_strided_slice %16 {offsets = [12, 0], sizes = [2, 64], strides = [1, 1]} : vector<16x64xf32> to vector<2x64xf32>
    %62 = vector.extract_strided_slice %61 {offsets = [0, 0], sizes = [2, 32], strides = [1, 1]} : vector<2x64xf32> to vector<2x32xf32>
    %63 = vector.extract_strided_slice %61 {offsets = [0, 32], sizes = [2, 32], strides = [1, 1]} : vector<2x64xf32> to vector<2x32xf32>
    %64 = tpu.concatenate %62, %21, %63, %21 in 1 : vector<2x32xf32>, vector<2x32xf32>, vector<2x32xf32>, vector<2x32xf32> -> vector<2x128xf32>
    %65 = vector.extract_strided_slice %16 {offsets = [14, 0], sizes = [2, 64], strides = [1, 1]} : vector<16x64xf32> to vector<2x64xf32>
    %66 = vector.extract_strided_slice %65 {offsets = [0, 0], sizes = [2, 32], strides = [1, 1]} : vector<2x64xf32> to vector<2x32xf32>
    %67 = vector.extract_strided_slice %65 {offsets = [0, 32], sizes = [2, 32], strides = [1, 1]} : vector<2x64xf32> to vector<2x32xf32>
    %68 = tpu.concatenate %66, %21, %67, %21 in 1 : vector<2x32xf32>, vector<2x32xf32>, vector<2x32xf32>, vector<2x32xf32> -> vector<2x128xf32>
    %69 = tpu.iota {dimensions = array<i32: 1>} : vector<2x64xi32>
    %c32_i32 = arith.constant 32 : i32
    %70 = vector.broadcast %c32_i32 : i32 to vector<2x64xi32>
    %71 = arith.cmpi slt, %69, %70 : vector<2x64xi32>
    %cst_19 = arith.constant 0.000000e+00 : f32
    %72 = vector.broadcast %cst_19 : f32 to vector<2x64xf32>
    %cst_20 = arith.constant dense<0.000000e+00> : vector<2x128xf32>
    %73 = tpu.matmul %72, %4, %cst_20 {dimension_numbers = #tpu.dot_dimension_numbers<[1], [0], [0], [1], [0, 0, 1, 1], [], []>} : vector<2x64xf32>, vector<64x128xf32>, vector<2x128xf32> -> vector<2x128xf32>
    %74 = arith.addf %28, %73 : vector<2x128xf32>
    %75 = vector.extract_strided_slice %74 {offsets = [0, 0], sizes = [2, 64], strides = [1, 1]} : vector<2x128xf32> to vector<2x64xf32>
    %76 = arith.negf %75 : vector<2x64xf32>
    %77 = math.exp %76 : vector<2x64xf32>
    %cst_21 = arith.constant 1.000000e+00 : f32
    %78 = vector.broadcast %cst_21 : f32 to vector<2x64xf32>
    %79 = arith.addf %78, %77 : vector<2x64xf32>
    %80 = arith.divf %78, %79 : vector<2x64xf32>
    %81 = vector.extract_strided_slice %74 {offsets = [0, 64], sizes = [2, 64], strides = [1, 1]} : vector<2x128xf32> to vector<2x64xf32>
    %82 = math.tanh %81 : vector<2x64xf32>
    %83 = arith.subf %82, %72 : vector<2x64xf32>
    %84 = arith.mulf %80, %83 : vector<2x64xf32>
    %85 = arith.addf %72, %84 : vector<2x64xf32>
    %86 = vector.extract_strided_slice %85 {offsets = [0, 0], sizes = [2, 32], strides = [1, 1]} : vector<2x64xf32> to vector<2x32xf32>
    %cst_22 = arith.constant dense<0.000000e+00> : vector<2x128xf32>
    %87 = tpu.matmul %85, %4, %cst_22 {dimension_numbers = #tpu.dot_dimension_numbers<[1], [0], [0], [1], [0, 0, 1, 1], [], []>} : vector<2x64xf32>, vector<64x128xf32>, vector<2x128xf32> -> vector<2x128xf32>
    %88 = arith.addf %35, %87 : vector<2x128xf32>
    %89 = vector.extract_strided_slice %88 {offsets = [0, 0], sizes = [2, 64], strides = [1, 1]} : vector<2x128xf32> to vector<2x64xf32>
    %90 = arith.negf %89 : vector<2x64xf32>
    %91 = math.exp %90 : vector<2x64xf32>
    %cst_23 = arith.constant 1.000000e+00 : f32
    %92 = vector.broadcast %cst_23 : f32 to vector<2x64xf32>
    %93 = arith.addf %92, %91 : vector<2x64xf32>
    %94 = arith.divf %92, %93 : vector<2x64xf32>
    %95 = vector.extract_strided_slice %88 {offsets = [0, 64], sizes = [2, 64], strides = [1, 1]} : vector<2x128xf32> to vector<2x64xf32>
    %96 = math.tanh %95 : vector<2x64xf32>
    %97 = arith.subf %96, %85 : vector<2x64xf32>
    %98 = arith.mulf %94, %97 : vector<2x64xf32>
    %99 = arith.addf %85, %98 : vector<2x64xf32>
    %100 = vector.extract_strided_slice %99 {offsets = [0, 0], sizes = [2, 32], strides = [1, 1]} : vector<2x64xf32> to vector<2x32xf32>
    %cst_24 = arith.constant dense<0.000000e+00> : vector<2x128xf32>
    %101 = tpu.matmul %99, %4, %cst_24 {dimension_numbers = #tpu.dot_dimension_numbers<[1], [0], [0], [1], [0, 0, 1, 1], [], []>} : vector<2x64xf32>, vector<64x128xf32>, vector<2x128xf32> -> vector<2x128xf32>
    %102 = arith.addf %42, %101 : vector<2x128xf32>
    %103 = vector.extract_strided_slice %102 {offsets = [0, 0], sizes = [2, 64], strides = [1, 1]} : vector<2x128xf32> to vector<2x64xf32>
    %104 = arith.negf %103 : vector<2x64xf32>
    %105 = math.exp %104 : vector<2x64xf32>
    %cst_25 = arith.constant 1.000000e+00 : f32
    %106 = vector.broadcast %cst_25 : f32 to vector<2x64xf32>
    %107 = arith.addf %106, %105 : vector<2x64xf32>
    %108 = arith.divf %106, %107 : vector<2x64xf32>
    %109 = vector.extract_strided_slice %102 {offsets = [0, 64], sizes = [2, 64], strides = [1, 1]} : vector<2x128xf32> to vector<2x64xf32>
    %110 = math.tanh %109 : vector<2x64xf32>
    %111 = arith.subf %110, %99 : vector<2x64xf32>
    %112 = arith.mulf %108, %111 : vector<2x64xf32>
    %113 = arith.addf %99, %112 : vector<2x64xf32>
    %114 = vector.extract_strided_slice %113 {offsets = [0, 0], sizes = [2, 32], strides = [1, 1]} : vector<2x64xf32> to vector<2x32xf32>
    %cst_26 = arith.constant dense<0.000000e+00> : vector<2x128xf32>
    %115 = tpu.matmul %113, %4, %cst_26 {dimension_numbers = #tpu.dot_dimension_numbers<[1], [0], [0], [1], [0, 0, 1, 1], [], []>} : vector<2x64xf32>, vector<64x128xf32>, vector<2x128xf32> -> vector<2x128xf32>
    %116 = arith.addf %49, %115 : vector<2x128xf32>
    %117 = vector.extract_strided_slice %116 {offsets = [0, 0], sizes = [2, 64], strides = [1, 1]} : vector<2x128xf32> to vector<2x64xf32>
    %118 = arith.negf %117 : vector<2x64xf32>
    %119 = math.exp %118 : vector<2x64xf32>
    %cst_27 = arith.constant 1.000000e+00 : f32
    %120 = vector.broadcast %cst_27 : f32 to vector<2x64xf32>
    %121 = arith.addf %120, %119 : vector<2x64xf32>
    %122 = arith.divf %120, %121 : vector<2x64xf32>
    %123 = vector.extract_strided_slice %116 {offsets = [0, 64], sizes = [2, 64], strides = [1, 1]} : vector<2x128xf32> to vector<2x64xf32>
    %124 = math.tanh %123 : vector<2x64xf32>
    %125 = arith.subf %124, %113 : vector<2x64xf32>
    %126 = arith.mulf %122, %125 : vector<2x64xf32>
    %127 = arith.addf %113, %126 : vector<2x64xf32>
    %128 = vector.extract_strided_slice %127 {offsets = [0, 0], sizes = [2, 32], strides = [1, 1]} : vector<2x64xf32> to vector<2x32xf32>
    %cst_28 = arith.constant dense<0.000000e+00> : vector<2x128xf32>
    %129 = tpu.matmul %127, %4, %cst_28 {dimension_numbers = #tpu.dot_dimension_numbers<[1], [0], [0], [1], [0, 0, 1, 1], [], []>} : vector<2x64xf32>, vector<64x128xf32>, vector<2x128xf32> -> vector<2x128xf32>
    %130 = arith.addf %56, %129 : vector<2x128xf32>
    %131 = vector.extract_strided_slice %130 {offsets = [0, 0], sizes = [2, 64], strides = [1, 1]} : vector<2x128xf32> to vector<2x64xf32>
    %132 = arith.negf %131 : vector<2x64xf32>
    %133 = math.exp %132 : vector<2x64xf32>
    %cst_29 = arith.constant 1.000000e+00 : f32
    %134 = vector.broadcast %cst_29 : f32 to vector<2x64xf32>
    %135 = arith.addf %134, %133 : vector<2x64xf32>
    %136 = arith.divf %134, %135 : vector<2x64xf32>
    %137 = vector.extract_strided_slice %130 {offsets = [0, 64], sizes = [2, 64], strides = [1, 1]} : vector<2x128xf32> to vector<2x64xf32>
    %138 = math.tanh %137 : vector<2x64xf32>
    %139 = arith.subf %138, %127 : vector<2x64xf32>
    %140 = arith.mulf %136, %139 : vector<2x64xf32>
    %141 = arith.addf %127, %140 : vector<2x64xf32>
    %142 = vector.extract_strided_slice %141 {offsets = [0, 0], sizes = [2, 32], strides = [1, 1]} : vector<2x64xf32> to vector<2x32xf32>
    %cst_30 = arith.constant dense<0.000000e+00> : vector<2x128xf32>
    %143 = tpu.matmul %141, %4, %cst_30 {dimension_numbers = #tpu.dot_dimension_numbers<[1], [0], [0], [1], [0, 0, 1, 1], [], []>} : vector<2x64xf32>, vector<64x128xf32>, vector<2x128xf32> -> vector<2x128xf32>
    %144 = arith.addf %60, %143 : vector<2x128xf32>
    %145 = vector.extract_strided_slice %144 {offsets = [0, 0], sizes = [2, 64], strides = [1, 1]} : vector<2x128xf32> to vector<2x64xf32>
    %146 = arith.negf %145 : vector<2x64xf32>
    %147 = math.exp %146 : vector<2x64xf32>
    %cst_31 = arith.constant 1.000000e+00 : f32
    %148 = vector.broadcast %cst_31 : f32 to vector<2x64xf32>
    %149 = arith.addf %148, %147 : vector<2x64xf32>
    %150 = arith.divf %148, %149 : vector<2x64xf32>
    %151 = vector.extract_strided_slice %144 {offsets = [0, 64], sizes = [2, 64], strides = [1, 1]} : vector<2x128xf32> to vector<2x64xf32>
    %152 = math.tanh %151 : vector<2x64xf32>
    %153 = arith.subf %152, %141 : vector<2x64xf32>
    %154 = arith.mulf %150, %153 : vector<2x64xf32>
    %155 = arith.addf %141, %154 : vector<2x64xf32>
    %156 = arith.select %71, %155, %141 : vector<2x64xi1>, vector<2x64xf32>
    %157 = vector.extract_strided_slice %156 {offsets = [0, 0], sizes = [2, 32], strides = [1, 1]} : vector<2x64xf32> to vector<2x32xf32>
    %cst_32 = arith.constant dense<0.000000e+00> : vector<2x128xf32>
    %158 = tpu.matmul %156, %4, %cst_32 {dimension_numbers = #tpu.dot_dimension_numbers<[1], [0], [0], [1], [0, 0, 1, 1], [], []>} : vector<2x64xf32>, vector<64x128xf32>, vector<2x128xf32> -> vector<2x128xf32>
    %159 = arith.addf %64, %158 : vector<2x128xf32>
    %160 = vector.extract_strided_slice %159 {offsets = [0, 0], sizes = [2, 64], strides = [1, 1]} : vector<2x128xf32> to vector<2x64xf32>
    %161 = arith.negf %160 : vector<2x64xf32>
    %162 = math.exp %161 : vector<2x64xf32>
    %cst_33 = arith.constant 1.000000e+00 : f32
    %163 = vector.broadcast %cst_33 : f32 to vector<2x64xf32>
    %164 = arith.addf %163, %162 : vector<2x64xf32>
    %165 = arith.divf %163, %164 : vector<2x64xf32>
    %166 = vector.extract_strided_slice %159 {offsets = [0, 64], sizes = [2, 64], strides = [1, 1]} : vector<2x128xf32> to vector<2x64xf32>
    %167 = math.tanh %166 : vector<2x64xf32>
    %168 = arith.subf %167, %156 : vector<2x64xf32>
    %169 = arith.mulf %165, %168 : vector<2x64xf32>
    %170 = arith.addf %156, %169 : vector<2x64xf32>
    %171 = arith.select %71, %170, %156 : vector<2x64xi1>, vector<2x64xf32>
    %172 = vector.extract_strided_slice %171 {offsets = [0, 0], sizes = [2, 32], strides = [1, 1]} : vector<2x64xf32> to vector<2x32xf32>
    %cst_34 = arith.constant dense<0.000000e+00> : vector<2x128xf32>
    %173 = tpu.matmul %171, %4, %cst_34 {dimension_numbers = #tpu.dot_dimension_numbers<[1], [0], [0], [1], [0, 0, 1, 1], [], []>} : vector<2x64xf32>, vector<64x128xf32>, vector<2x128xf32> -> vector<2x128xf32>
    %174 = arith.addf %68, %173 : vector<2x128xf32>
    %175 = vector.extract_strided_slice %174 {offsets = [0, 0], sizes = [2, 64], strides = [1, 1]} : vector<2x128xf32> to vector<2x64xf32>
    %176 = arith.negf %175 : vector<2x64xf32>
    %177 = math.exp %176 : vector<2x64xf32>
    %cst_35 = arith.constant 1.000000e+00 : f32
    %178 = vector.broadcast %cst_35 : f32 to vector<2x64xf32>
    %179 = arith.addf %178, %177 : vector<2x64xf32>
    %180 = arith.divf %178, %179 : vector<2x64xf32>
    %181 = vector.extract_strided_slice %174 {offsets = [0, 64], sizes = [2, 64], strides = [1, 1]} : vector<2x128xf32> to vector<2x64xf32>
    %182 = math.tanh %181 : vector<2x64xf32>
    %183 = arith.subf %182, %171 : vector<2x64xf32>
    %184 = arith.mulf %180, %183 : vector<2x64xf32>
    %185 = arith.addf %171, %184 : vector<2x64xf32>
    %186 = arith.select %71, %185, %171 : vector<2x64xi1>, vector<2x64xf32>
    %187 = vector.extract_strided_slice %186 {offsets = [0, 0], sizes = [2, 32], strides = [1, 1]} : vector<2x64xf32> to vector<2x32xf32>
    %188 = tpu.concatenate %86, %100, %114, %128, %142, %157, %172, %187 in 0 : vector<2x32xf32>, vector<2x32xf32>, vector<2x32xf32>, vector<2x32xf32>, vector<2x32xf32>, vector<2x32xf32>, vector<2x32xf32>, vector<2x32xf32> -> vector<16x32xf32>
    %cst_36 = arith.constant dense<0.000000e+00> : vector<16x32xf32>
    %189 = tpu.matmul %188, %5, %cst_36 {dimension_numbers = #tpu.dot_dimension_numbers<[1], [0], [0], [1], [0, 0, 1, 1], [], []>} : vector<16x32xf32>, vector<32x32xf32>, vector<16x32xf32> -> vector<16x32xf32>
    %190 = vector.broadcast %6 : vector<1x32xf32> to vector<16x32xf32>
    %191 = arith.addf %189, %190 : vector<16x32xf32>
    %192 = math.tanh %191 : vector<16x32xf32>
    %193 = vector.broadcast %7 : vector<1x32xf32> to vector<16x32xf32>
    %194 = arith.mulf %192, %193 : vector<16x32xf32>
    %cst_37 = arith.constant dense<0.000000e+00> : vector<16xf32>
    %195 = vector.multi_reduction <add>, %194, %cst_37 [1] : vector<16x32xf32> to vector<16xf32>
    %196 = vector.shape_cast %195 : vector<16xf32> to vector<16x1xf32>
    %197 = vector.broadcast %8 : vector<1x1xf32> to vector<16x1xf32>
    %198 = arith.addf %196, %197 : vector<16x1xf32>
    %199 = vector.extract_strided_slice %198 {offsets = [0, 0], sizes = [2, 1], strides = [1, 1]} : vector<16x1xf32> to vector<2x1xf32>
    %200 = vector.extract_strided_slice %198 {offsets = [2, 0], sizes = [2, 1], strides = [1, 1]} : vector<16x1xf32> to vector<2x1xf32>
    %201 = vector.extract_strided_slice %198 {offsets = [4, 0], sizes = [2, 1], strides = [1, 1]} : vector<16x1xf32> to vector<2x1xf32>
    %202 = vector.extract_strided_slice %198 {offsets = [6, 0], sizes = [2, 1], strides = [1, 1]} : vector<16x1xf32> to vector<2x1xf32>
    %203 = vector.extract_strided_slice %198 {offsets = [8, 0], sizes = [2, 1], strides = [1, 1]} : vector<16x1xf32> to vector<2x1xf32>
    %204 = vector.extract_strided_slice %198 {offsets = [10, 0], sizes = [2, 1], strides = [1, 1]} : vector<16x1xf32> to vector<2x1xf32>
    %205 = vector.extract_strided_slice %198 {offsets = [12, 0], sizes = [2, 1], strides = [1, 1]} : vector<16x1xf32> to vector<2x1xf32>
    %206 = vector.extract_strided_slice %198 {offsets = [14, 0], sizes = [2, 1], strides = [1, 1]} : vector<16x1xf32> to vector<2x1xf32>
    %207 = tpu.concatenate %199, %200, %201, %202, %203, %204, %205, %206 in 1 : vector<2x1xf32>, vector<2x1xf32>, vector<2x1xf32>, vector<2x1xf32>, vector<2x1xf32>, vector<2x1xf32>, vector<2x1xf32>, vector<2x1xf32> -> vector<2x8xf32>
    %cst_38 = arith.constant dense<0xFF800000> : vector<2xf32>
    %208 = vector.multi_reduction <maximumf>, %207, %cst_38 [1] : vector<2x8xf32> to vector<2xf32>
    %209 = vector.shape_cast %208 : vector<2xf32> to vector<2x1xf32>
    %210 = vector.broadcast %209 : vector<2x1xf32> to vector<2x8xf32>
    %211 = arith.subf %207, %210 : vector<2x8xf32>
    %212 = math.exp %211 : vector<2x8xf32>
    %cst_39 = arith.constant dense<0.000000e+00> : vector<2xf32>
    %213 = vector.multi_reduction <add>, %212, %cst_39 [1] : vector<2x8xf32> to vector<2xf32>
    %214 = vector.shape_cast %213 : vector<2xf32> to vector<2x1xf32>
    %215 = vector.broadcast %214 : vector<2x1xf32> to vector<2x8xf32>
    %216 = arith.divf %212, %215 : vector<2x8xf32>
    %c0_40 = arith.constant 0 : index
    %c0_41 = arith.constant 0 : index
    %217 = vector.load %arg4[%c0_40, %c0_41] : memref<2x8xf32, #tpu.memory_space<vmem>>, vector<2x8xf32>
    tpu.vector_store %arg4[%c0_40, %c0_41], %216 {strides = array<i32>} : memref<2x8xf32, #tpu.memory_space<vmem>>, vector<2x8xf32>,
    %cst_42 = arith.constant 0.000000e+00 : f32
    %218 = vector.broadcast %cst_42 : f32 to vector<2x32xf32>
    %219 = vector.extract_strided_slice %216 {offsets = [0, 0], sizes = [2, 1], strides = [1, 1]} : vector<2x8xf32> to vector<2x1xf32>
    %220 = vector.broadcast %219 : vector<2x1xf32> to vector<2x32xf32>
    %221 = arith.mulf %220, %86 : vector<2x32xf32>
    %222 = arith.addf %218, %221 : vector<2x32xf32>
    %223 = vector.extract_strided_slice %216 {offsets = [0, 1], sizes = [2, 1], strides = [1, 1]} : vector<2x8xf32> to vector<2x1xf32>
    %224 = vector.broadcast %223 : vector<2x1xf32> to vector<2x32xf32>
    %225 = arith.mulf %224, %100 : vector<2x32xf32>
    %226 = arith.addf %222, %225 : vector<2x32xf32>
    %227 = vector.extract_strided_slice %216 {offsets = [0, 2], sizes = [2, 1], strides = [1, 1]} : vector<2x8xf32> to vector<2x1xf32>
    %228 = vector.broadcast %227 : vector<2x1xf32> to vector<2x32xf32>
    %229 = arith.mulf %228, %114 : vector<2x32xf32>
    %230 = arith.addf %226, %229 : vector<2x32xf32>
    %231 = vector.extract_strided_slice %216 {offsets = [0, 3], sizes = [2, 1], strides = [1, 1]} : vector<2x8xf32> to vector<2x1xf32>
    %232 = vector.broadcast %231 : vector<2x1xf32> to vector<2x32xf32>
    %233 = arith.mulf %232, %128 : vector<2x32xf32>
    %234 = arith.addf %230, %233 : vector<2x32xf32>
    %235 = vector.extract_strided_slice %216 {offsets = [0, 4], sizes = [2, 1], strides = [1, 1]} : vector<2x8xf32> to vector<2x1xf32>
    %236 = vector.broadcast %235 : vector<2x1xf32> to vector<2x32xf32>
    %237 = arith.mulf %236, %142 : vector<2x32xf32>
    %238 = arith.addf %234, %237 : vector<2x32xf32>
    %239 = vector.extract_strided_slice %216 {offsets = [0, 5], sizes = [2, 1], strides = [1, 1]} : vector<2x8xf32> to vector<2x1xf32>
    %240 = vector.broadcast %239 : vector<2x1xf32> to vector<2x32xf32>
    %241 = arith.mulf %240, %157 : vector<2x32xf32>
    %242 = arith.addf %238, %241 : vector<2x32xf32>
    %243 = vector.extract_strided_slice %216 {offsets = [0, 6], sizes = [2, 1], strides = [1, 1]} : vector<2x8xf32> to vector<2x1xf32>
    %244 = vector.broadcast %243 : vector<2x1xf32> to vector<2x32xf32>
    %245 = arith.mulf %244, %172 : vector<2x32xf32>
    %246 = arith.addf %242, %245 : vector<2x32xf32>
    %247 = vector.extract_strided_slice %216 {offsets = [0, 7], sizes = [2, 1], strides = [1, 1]} : vector<2x8xf32> to vector<2x1xf32>
    %248 = vector.broadcast %247 : vector<2x1xf32> to vector<2x32xf32>
    %249 = arith.mulf %248, %187 : vector<2x32xf32>
    %250 = arith.addf %246, %249 : vector<2x32xf32>
    %251 = vector.extract_strided_slice %186 {offsets = [0, 32], sizes = [2, 32], strides = [1, 1]} : vector<2x64xf32> to vector<2x32xf32>
    %252 = tpu.concatenate %250, %251 in 1 : vector<2x32xf32>, vector<2x32xf32> -> vector<2x64xf32>
    %cst_43 = arith.constant dense<0.000000e+00> : vector<2x32xf32>
    %253 = tpu.matmul %252, %9, %cst_43 {dimension_numbers = #tpu.dot_dimension_numbers<[1], [0], [0], [1], [0, 0, 1, 1], [], []>} : vector<2x64xf32>, vector<64x32xf32>, vector<2x32xf32> -> vector<2x32xf32>
    %254 = vector.broadcast %10 : vector<1x32xf32> to vector<2x32xf32>
    %255 = arith.addf %253, %254 : vector<2x32xf32>
    %cst_44 = arith.constant 0.000000e+00 : f32
    %256 = vector.broadcast %cst_44 : f32 to vector<2x32xf32>
    %257 = arith.maximumf %255, %256 : vector<2x32xf32>
    %cst_45 = arith.constant dense<0.000000e+00> : vector<2x3xf32>
    %258 = tpu.matmul %257, %11, %cst_45 {dimension_numbers = #tpu.dot_dimension_numbers<[1], [0], [0], [1], [0, 0, 1, 1], [], []>} : vector<2x32xf32>, vector<32x3xf32>, vector<2x3xf32> -> vector<2x3xf32>
    %259 = vector.broadcast %12 : vector<1x3xf32> to vector<2x3xf32>
    %260 = arith.addf %258, %259 : vector<2x3xf32>
    %c0_46 = arith.constant 0 : index
    %c0_47 = arith.constant 0 : index
    %261 = vector.load %arg3[%c0_46, %c0_47] : memref<2x3xf32, #tpu.memory_space<vmem>>, vector<2x3xf32>
    tpu.vector_store %arg3[%c0_46, %c0_47], %260 {strides = array<i32>} : memref<2x3xf32, #tpu.memory_space<vmem>>, vector<2x3xf32>,
    return
  }
}

</mosaic_0001>

<llo_original>
// kernel: forward.1
$region0: #{forward.1}
  #allocation0 [shape = 'u32[]', space=smem, size = 0x4, offset = 0x4, fixed_abs, tag = 'smem constant byte address 0x4 - core index']
  #allocation1 [shape = 'u32[144,128]{1,0:T(1,128)}', space=vmem, size = 0x12000, scoped, tag = 'internal scratch']
  %s0 = inlined_call_operand.vmem [shape: f32[16,32], index: 0, kind: input, shape index: {}]
  %s1 = inlined_call_operand.vmem [shape: f32[10,32], index: 1, kind: input, shape index: {}]
  %s2 = inlined_call_operand.vmem [shape: f32[312,128], index: 2, kind: input, shape index: {}]
  %s3 = inlined_call_operand.hbm [shape: f32[2,3], index: 3, kind: output, shape index: {0}]
  %s4 = inlined_call_operand.hbm [shape: f32[2,8], index: 4, kind: output, shape index: {1}]
  %5 = xla_tuple %s3, %s4
  %s6 = sld [smem:[#allocation0]]
  $region30: #{forward.1} parent=0
    _
  %s8 = ssub.s32 1, %s6
  %s9 = scalar_select 0, %s8, %s6
  $region1: #{forward.1} parent=0
    #allocation2 [shape = 'u8[1024]{0}', space=vmem, size = 0x400, scoped, tag = 'output window, operand 0, single buffered']
    #allocation3 [shape = 's32[1]{0}', space=sflag, size = 0x4, scoped, tag = 'scoped memory for forward.1']
    #allocation4 [shape = 'u8[1024]{0}', space=vmem, size = 0x400, scoped, tag = 'output window, operand 1, single buffered']
    #allocation5 [shape = 's32[1]{0}', space=sflag, size = 0x4, scoped, tag = 'scoped memory for forward.1']
    %10 = vsyncpa [#allocation3], 0
    %11 = vsyncpa [#allocation5], 0
    // Predicated region
    $region2: #{forward.1} parent=1 // pred_check
      _
    $region3: #{forward.1} parent=1 // pred_check_branch
      %13 = sbr.rel (0) target = $region5
    $region4: #{forward.1} parent=1 // pred_region
      _
    $region5: #{forward.1} parent=1 // pred_fallthru
      _
    // Predicated region
    $region6: #{forward.1} parent=1 // pred_check
      _
    $region7: #{forward.1} parent=1 // pred_check_branch
      %15 = sbr.rel (0) target = $region9
    $region8: #{forward.1} parent=1 // pred_region
      _
    $region9: #{forward.1} parent=1 // pred_fallthru
      _
    // Predicated region
    $region10: #{forward.1} parent=1 // pred_check
      _
    $region11: #{forward.1} parent=1 // pred_check_branch
      %17 = sbr.rel (0) target = $region13
    $region12: #{forward.1} parent=1 // pred_region
      _
    $region13: #{forward.1} parent=1 // pred_fallthru
      _
    %v18 = vld [vmem:[%s2] sm:$0xff]
    %v19 = vld [vmem:[%s2 + $0x8] sm:$0xff]
    %v20 = vld [vmem:[%s2 + $0x10] sm:$0xff]
    %v21 = vld [vmem:[%s2 + $0x18] sm:$0xff]
    %v22 = vld [vmem:[%s2 + $0x100] sm:$0x1]
    %v23 = vld [vmem:[%s2 + $0x20] sm:$0xff]
    %v24 = vld [vmem:[%s2 + $0x28] sm:$0xff]
    %v25 = vld [vmem:[%s2 + $0x30] sm:$0xff]
    %v26 = vld [vmem:[%s2 + $0x38] sm:$0xff]
    %v27 = vld [vmem:[%s2 + $0x108] sm:$0x1]
    %v28 = vld [vmem:[%s2 + $0x40] sm:$0xff]
    %v29 = vld [vmem:[%s2 + $0x48] sm:$0xff]
    %v30 = vld [vmem:[%s2 + $0x50] sm:$0xff]
    %v31 = vld [vmem:[%s2 + $0x58] sm:$0xff]
    %v32 = vld [vmem:[%s2 + $0x60] sm:$0xff]
    %v33 = vld [vmem:[%s2 + $0x68] sm:$0xff]
    %v34 = vld [vmem:[%s2 + $0x70] sm:$0xff]
    %v35 = vld [vmem:[%s2 + $0x78] sm:$0xff]
    %v36 = vld [vmem:[%s2 + $0x80] sm:$0xff]
    %v37 = vld [vmem:[%s2 + $0x88] sm:$0xff]
    %v38 = vld [vmem:[%s2 + $0x90] sm:$0xff]
    %v39 = vld [vmem:[%s2 + $0x98] sm:$0xff]
    %v40 = vld [vmem:[%s2 + $0x110] sm:$0x1]
    %v41 = vld [vmem:[%s2 + $0x118] sm:$0x1]
    %v42 = vld [vmem:[%s2 + $0x120] sm:$0x1]
    %v43 = vld [vmem:[%s2 + $0xa0] sm:$0xff]
    %v44 = vld [vmem:[%s2 + $0xa8] sm:$0xff]
    %v45 = vld [vmem:[%s2 + $0xb0] sm:$0xff]
    %v46 = vld [vmem:[%s2 + $0xb8] sm:$0xff]
    %v47 = vld [vmem:[%s2 + $0xc0] sm:$0xff]
    %v48 = vld [vmem:[%s2 + $0xc8] sm:$0xff]
    %v49 = vld [vmem:[%s2 + $0xd0] sm:$0xff]
    %v50 = vld [vmem:[%s2 + $0xd8] sm:$0xff]
    %v51 = vld [vmem:[%s2 + $0x128] sm:$0x1]
    %v52 = vld [vmem:[%s2 + $0xe0] sm:$0xff]
    %v53 = vld [vmem:[%s2 + $0xe8] sm:$0xff]
    %v54 = vld [vmem:[%s2 + $0xf0] sm:$0xff]
    %v55 = vld [vmem:[%s2 + $0xf8] sm:$0xff]
    %v56 = vld [vmem:[%s2 + $0x130] sm:$0x1]
    %v57 = vld [vmem:[%s0] sm:$0xff]
    %v58 = vld [vmem:[%s0 + $0x8] sm:$0xff]
    %v59 = vlaneseq
    %v60 = vshrl.u32 %v59, 7
    %v61 = vsub.s32 0, %v60
    %v62 = vrot.slane %v22, %v61
    %vm63 = vcmask 261120
    %v65 = vsel %vm63, %v57, 0
    %v68 = vsel %vm63, %v58, 0
    %70 = vmatprep.subr.mxu0 0.0
    %71 = vmatpush1.msra.mxu0 0.0
    %72 = vmatprep.subr.mxu0 0.0
    %73 = vmatpush1.msra.mxu0 0.0
    %74 = vmatprep.subr.mxu0 0.0
    %75 = vmatpush1.msra.mxu0 0.0
    %76 = vmatprep.subr.mxu0 0.0
    %77 = vmatpush1.msra.mxu0 0.0
    %78 = vmatprep.subr.mxu0 0.0
    %79 = vmatpush1.msra.mxu0 0.0
    %80 = vmatprep.subr.mxu0 0.0
    %81 = vmatpush1.msra.mxu0 0.0
    %82 = vmatprep.subr.mxu0 0.0
    %83 = vmatpush1.msra.mxu0 0.0
    %84 = vmatprep.subr.mxu0 0.0
    %85 = vmatpush1.msra.mxu0 0.0
    %86 = vmatprep.subr.mxu0 0.0
    %87 = vmatpush1.msra.mxu0 0.0
    %88 = vmatprep.subr.mxu0 0.0
    %89 = vmatpush1.msra.mxu0 0.0
    %90 = vmatprep.subr.mxu0 0.0
    %91 = vmatpush1.msra.mxu0 0.0
    %92 = vmatprep.subr.mxu0 0.0
    %93 = vmatpush1.msra.mxu0 0.0
    %94 = vmatprep.subr.mxu0 0.0
    %95 = vmatpush1.msra.mxu0 %v21
    %96 = vmatprep.subr.mxu0 0.0
    %97 = vmatpush1.msra.mxu0 %v20
    %98 = vmatprep.subr.mxu0 0.0
    %99 = vmatpush1.msra.mxu0 %v19
    %100 = vmatprep.subr.mxu0 0.0
    %101 = vmatpush1.msra.mxu0 %v18
    %102 = vmatprep.subr.mxu0 0.0
    %103 = vmatpush2.msra.mxu0 0.0
    %104 = vmatprep.subr.mxu0 0.0
    %105 = vmatpush2.msra.mxu0 0.0
    %106 = vmatprep.subr.mxu0 0.0
    %107 = vmatpush2.msra.mxu0 0.0
    %108 = vmatprep.subr.mxu0 0.0
    %109 = vmatpush2.msra.mxu0 0.0
    %110 = vmatprep.subr.mxu0 0.0
    %111 = vmatpush2.msra.mxu0 0.0
    %112 = vmatprep.subr.mxu0 0.0
    %113 = vmatpush2.msra.mxu0 0.0
    %114 = vmatprep.subr.mxu0 0.0
    %115 = vmatpush2.msra.mxu0 0.0
    %116 = vmatprep.subr.mxu0 0.0
    %117 = vmatpush2.msra.mxu0 0.0
    %118 = vmatprep.subr.mxu0 0.0
    %119 = vmatpush2.msra.mxu0 0.0
    %120 = vmatprep.subr.mxu0 0.0
    %121 = vmatpush2.msra.mxu0 0.0
    %122 = vmatprep.subr.mxu0 0.0
    %123 = vmatpush2.msra.mxu0 0.0
    %124 = vmatprep.subr.mxu0 0.0
    %125 = vmatpush2.msra.mxu0 0.0
    %126 = vmatprep.subr.mxu0 0.0
    %127 = vmatpush2.msra.mxu0 0.0
    %128 = vmatprep.subr.mxu0 0.0
    %129 = vmatpush2.msra.mxu0 0.0
    %130 = vmatprep.subr.mxu0 0.0
    %131 = vmatpush2.msra.mxu0 0.0
    %132 = vmatprep.subr.mxu0 0.0
    %133 = vmatpush2.msra.mxu0 0.0
    %134 = vmatprep.mubr.f32.mxu0 0.0
    %135 = vmatmul.mubr.f32.gmra.mxu0 %v65
    %v136 = vpop.f32.mrf.mxu0
    %v137 = vadd.f32 %v62, %v136
    %v138 = vpop.f32.mrf.mxu0
    %139 = vmatprep.mubr.f32.mxu0 0.0
    %140 = vmatmul.mubr.f32.gmra.mxu0 %v68
    %v141 = vpop.f32.mrf.mxu0
    %v142 = vadd.f32 %v62, %v141
    %v143 = vpop.f32.mrf.mxu0
    %144 = vdwg.mxu0
    %v145 = vld [vmem:[%s1] sm:$0xff]
    %v146 = vld [vmem:[%s1 + $0x8] sm:$0x3]
    %v147 = vlaneseq
    %v148 = vshrl.u32 %v147, 7
    %v149 = vsub.s32 0, %v148
    %v150 = vrot.slane %v27, %v149
    %v152 = vsel %vm63, %v145, 0
    %v155 = vsel %vm63, %v146, 0
    %157 = vmatprep.subr.mxu0 0.0
    %158 = vmatpush1.msra.mxu0 0.0
    %159 = vmatprep.subr.mxu0 0.0
    %160 = vmatpush1.msra.mxu0 0.0
    %161 = vmatprep.subr.mxu0 0.0
    %162 = vmatpush1.msra.mxu0 0.0
    %163 = vmatprep.subr.mxu0 0.0
    %164 = vmatpush1.msra.mxu0 0.0
    %165 = vmatprep.subr.mxu0 0.0
    %166 = vmatpush1.msra.mxu0 0.0
    %167 = vmatprep.subr.mxu0 0.0
    %168 = vmatpush1.msra.mxu0 0.0
    %169 = vmatprep.subr.mxu0 0.0
    %170 = vmatpush1.msra.mxu0 0.0
    %171 = vmatprep.subr.mxu0 0.0
    %172 = vmatpush1.msra.mxu0 0.0
    %173 = vmatprep.subr.mxu0 0.0
    %174 = vmatpush1.msra.mxu0 0.0
    %175 = vmatprep.subr.mxu0 0.0
    %176 = vmatpush1.msra.mxu0 0.0
    %177 = vmatprep.subr.mxu0 0.0
    %178 = vmatpush1.msra.mxu0 0.0
    %179 = vmatprep.subr.mxu0 0.0
    %180 = vmatpush1.msra.mxu0 0.0
    %181 = vmatprep.subr.mxu0 0.0
    %182 = vmatpush1.msra.mxu0 %v26
    %183 = vmatprep.subr.mxu0 0.0
    %184 = vmatpush1.msra.mxu0 %v25
    %185 = vmatprep.subr.mxu0 0.0
    %186 = vmatpush1.msra.mxu0 %v24
    %187 = vmatprep.subr.mxu0 0.0
    %188 = vmatpush1.msra.mxu0 %v23
    %189 = vmatprep.subr.mxu0 0.0
    %190 = vmatpush2.msra.mxu0 0.0
    %191 = vmatprep.subr.mxu0 0.0
    %192 = vmatpush2.msra.mxu0 0.0
    %193 = vmatprep.subr.mxu0 0.0
    %194 = vmatpush2.msra.mxu0 0.0
    %195 = vmatprep.subr.mxu0 0.0
    %196 = vmatpush2.msra.mxu0 0.0
    %197 = vmatprep.subr.mxu0 0.0
    %198 = vmatpush2.msra.mxu0 0.0
    %199 = vmatprep.subr.mxu0 0.0
    %200 = vmatpush2.msra.mxu0 0.0
    %201 = vmatprep.subr.mxu0 0.0
    %202 = vmatpush2.msra.mxu0 0.0
    %203 = vmatprep.subr.mxu0 0.0
    %204 = vmatpush2.msra.mxu0 0.0
    %205 = vmatprep.subr.mxu0 0.0
    %206 = vmatpush2.msra.mxu0 0.0
    %207 = vmatprep.subr.mxu0 0.0
    %208 = vmatpush2.msra.mxu0 0.0
    %209 = vmatprep.subr.mxu0 0.0
    %210 = vmatpush2.msra.mxu0 0.0
    %211 = vmatprep.subr.mxu0 0.0
    %212 = vmatpush2.msra.mxu0 0.0
    %213 = vmatprep.subr.mxu0 0.0
    %214 = vmatpush2.msra.mxu0 0.0
    %215 = vmatprep.subr.mxu0 0.0
    %216 = vmatpush2.msra.mxu0 0.0
    %217 = vmatprep.subr.mxu0 0.0
    %218 = vmatpush2.msra.mxu0 0.0
    %219 = vmatprep.subr.mxu0 0.0
    %220 = vmatpush2.msra.mxu0 0.0
    %221 = vmatprep.mubr.f32.mxu0 0.0
    %222 = vmatmul.mubr.f32.gmra.mxu0 %v152
    %v223 = vpop.f32.mrf.mxu0
    %v224 = vadd.f32 %v150, %v223
    %v225 = vpop.f32.mrf.mxu0
    %226 = vmatprep.mubr.f32.mxu0 0.0
    %227 = vmatmul.mubr.f32.gmra.mxu0 %v155
    %v228 = vpop.f32.mrf.mxu0
    %v229 = vadd.f32 %v150, %v228
    %v230 = vpop.f32.mrf.mxu0
    %231 = vdwg.mxu0
    %233 = vrot.lane.b32.xlu0 %v224, 32
    %v234 = vpop.permute.xlu0 %233
    %237 = vrot.lane.b32.xlu0 %v137, 32
    %v238 = vpop.permute.xlu0 %237
    %240 = vrot.lane.b32.xlu0 %v224, 64
    %v241 = vpop.permute.xlu0 %240
    %v243 = vsel %vm63, %v137, %v234
    %vm244 = vcmask 523264
    %v245 = vsel %vm244, %v243, %v238
    %vm246 = vcmask 785408
    %v247 = vsel %vm246, %v245, %v241
    %249 = vrot.lane.b32.xlu0 %v229, 32
    %v250 = vpop.permute.xlu0 %249
    %253 = vrot.lane.b32.xlu0 %v142, 32
    %v254 = vpop.permute.xlu0 %253
    %256 = vrot.lane.b32.xlu0 %v229, 64
    %v257 = vpop.permute.xlu0 %256
    %v259 = vsel %vm63, %v142, %v250
    %v260 = vsel %vm244, %v259, %v254
    %v261 = vsel %vm246, %v260, %v257
    %v262 = vsel %vm63, %v142, 0.0
    %v263 = vsel %vm244, %v262, %v254
    %v264 = vsel %vm246, %v263, 0.0
    %v265 = vlaneseq
    %v266 = vand.u32 %v265, 127
    %vm267 = vcmp.lt.s32.totalorder %v266, 32
    %v269 = vsel %vm244, 0.0, 0
    %271 = vmatprep.subr.mxu0 0.0
    %272 = vmatpush1.msra.mxu0 0.0
    %273 = vmatprep.subr.mxu0 0.0
    %274 = vmatpush1.msra.mxu0 0.0
    %275 = vmatprep.subr.mxu0 0.0
    %276 = vmatpush1.msra.mxu0 0.0
    %277 = vmatprep.subr.mxu0 0.0
    %278 = vmatpush1.msra.mxu0 0.0
    %279 = vmatprep.subr.mxu0 0.0
    %280 = vmatpush1.msra.mxu0 0.0
    %281 = vmatprep.subr.mxu0 0.0
    %282 = vmatpush1.msra.mxu0 0.0
    %283 = vmatprep.subr.mxu0 0.0
    %284 = vmatpush1.msra.mxu0 0.0
    %285 = vmatprep.subr.mxu0 0.0
    %286 = vmatpush1.msra.mxu0 0.0
    %287 = vmatprep.subr.mxu0 0.0
    %288 = vmatpush1.msra.mxu0 %v35
    %289 = vmatprep.subr.mxu0 0.0
    %290 = vmatpush1.msra.mxu0 %v34
    %291 = vmatprep.subr.mxu0 0.0
    %292 = vmatpush1.msra.mxu0 %v33
    %293 = vmatprep.subr.mxu0 0.0
    %294 = vmatpush1.msra.mxu0 %v32
    %295 = vmatprep.subr.mxu0 0.0
    %296 = vmatpush1.msra.mxu0 %v31
    %297 = vmatprep.subr.mxu0 0.0
    %298 = vmatpush1.msra.mxu0 %v30
    %299 = vmatprep.subr.mxu0 0.0
    %300 = vmatpush1.msra.mxu0 %v29
    %301 = vmatprep.subr.mxu0 0.0
    %302 = vmatpush1.msra.mxu0 %v28
    %303 = vmatprep.subr.mxu0 0.0
    %304 = vmatpush2.msra.mxu0 0.0
    %305 = vmatprep.subr.mxu0 0.0
    %306 = vmatpush2.msra.mxu0 0.0
    %307 = vmatprep.subr.mxu0 0.0
    %308 = vmatpush2.msra.mxu0 0.0
    %309 = vmatprep.subr.mxu0 0.0
    %310 = vmatpush2.msra.mxu0 0.0
    %311 = vmatprep.subr.mxu0 0.0
    %312 = vmatpush2.msra.mxu0 0.0
    %313 = vmatprep.subr.mxu0 0.0
    %314 = vmatpush2.msra.mxu0 0.0
    %315 = vmatprep.subr.mxu0 0.0
    %316 = vmatpush2.msra.mxu0 0.0
    %317 = vmatprep.subr.mxu0 0.0
    %318 = vmatpush2.msra.mxu0 0.0
    %319 = vmatprep.subr.mxu0 0.0
    %320 = vmatpush2.msra.mxu0 0.0
    %321 = vmatprep.subr.mxu0 0.0
    %322 = vmatpush2.msra.mxu0 0.0
    %323 = vmatprep.subr.mxu0 0.0
    %324 = vmatpush2.msra.mxu0 0.0
    %325 = vmatprep.subr.mxu0 0.0
    %326 = vmatpush2.msra.mxu0 0.0
    %327 = vmatprep.subr.mxu0 0.0
    %328 = vmatpush2.msra.mxu0 0.0
    %329 = vmatprep.subr.mxu0 0.0
    %330 = vmatpush2.msra.mxu0 0.0
    %331 = vmatprep.subr.mxu0 0.0
    %332 = vmatpush2.msra.mxu0 0.0
    %333 = vmatprep.subr.mxu0 0.0
    %334 = vmatpush2.msra.mxu0 0.0
    %335 = vmatprep.mubr.f32.mxu0 0.0
    %336 = vmatmul.mubr.f32.gmra.mxu0 %v269
    %v337 = vpop.f32.mrf.mxu0
    %v338 = vadd.f32 0.0, %v337
    %v339 = vpop.f32.mrf.mxu0
    %340 = vdwg.mxu0
    %v341 = vadd.f32 %v247, %v338
    %v342 = vxor.u32 %v341, 2147483648
    %v343 = vmul.f32 %v342, 1.442695
    %v344 = vpow.pop %v343
    %v345 = vadd.f32 %v344, 1.0
    %v346 = vrcp.pop %v345
    %v347 = vmul.f32 1.0, %v346
    %v348 = vtanh.pop %v341
    %350 = vrot.lane.b32.xlu0 %v348, 64
    %v351 = vpop.permute.xlu0 %350
    %v353 = vmul.f32 %v347, %v351
    %v354 = vadd.f32 %v353, 0.0
    %v356 = vsel %vm244, %v354, 0
    %358 = vmatprep.subr.mxu0 0.0
    %359 = vmatpush1.msra.mxu0 0.0
    %360 = vmatprep.subr.mxu0 0.0
    %361 = vmatpush1.msra.mxu0 0.0
    %362 = vmatprep.subr.mxu0 0.0
    %363 = vmatpush1.msra.mxu0 0.0
    %364 = vmatprep.subr.mxu0 0.0
    %365 = vmatpush1.msra.mxu0 0.0
    %366 = vmatprep.subr.mxu0 0.0
    %367 = vmatpush1.msra.mxu0 0.0
    %368 = vmatprep.subr.mxu0 0.0
    %369 = vmatpush1.msra.mxu0 0.0
    %370 = vmatprep.subr.mxu0 0.0
    %371 = vmatpush1.msra.mxu0 0.0
    %372 = vmatprep.subr.mxu0 0.0
    %373 = vmatpush1.msra.mxu0 0.0
    %374 = vmatprep.subr.mxu0 0.0
    %375 = vmatpush1.msra.mxu0 %v35
    %376 = vmatprep.subr.mxu0 0.0
    %377 = vmatpush1.msra.mxu0 %v34
    %378 = vmatprep.subr.mxu0 0.0
    %379 = vmatpush1.msra.mxu0 %v33
    %380 = vmatprep.subr.mxu0 0.0
    %381 = vmatpush1.msra.mxu0 %v32
    %382 = vmatprep.subr.mxu0 0.0
    %383 = vmatpush1.msra.mxu0 %v31
    %384 = vmatprep.subr.mxu0 0.0
    %385 = vmatpush1.msra.mxu0 %v30
    %386 = vmatprep.subr.mxu0 0.0
    %387 = vmatpush1.msra.mxu0 %v29
    %388 = vmatprep.subr.mxu0 0.0
    %389 = vmatpush1.msra.mxu0 %v28
    %390 = vmatprep.subr.mxu0 0.0
    %391 = vmatpush2.msra.mxu0 0.0
    %392 = vmatprep.subr.mxu0 0.0
    %393 = vmatpush2.msra.mxu0 0.0
    %394 = vmatprep.subr.mxu0 0.0
    %395 = vmatpush2.msra.mxu0 0.0
    %396 = vmatprep.subr.mxu0 0.0
    %397 = vmatpush2.msra.mxu0 0.0
    %398 = vmatprep.subr.mxu0 0.0
    %399 = vmatpush2.msra.mxu0 0.0
    %400 = vmatprep.subr.mxu0 0.0
    %401 = vmatpush2.msra.mxu0 0.0
    %402 = vmatprep.subr.mxu0 0.0
    %403 = vmatpush2.msra.mxu0 0.0
    %404 = vmatprep.subr.mxu0 0.0
    %405 = vmatpush2.msra.mxu0 0.0
    %406 = vmatprep.subr.mxu0 0.0
    %407 = vmatpush2.msra.mxu0 0.0
    %408 = vmatprep.subr.mxu0 0.0
    %409 = vmatpush2.msra.mxu0 0.0
    %410 = vmatprep.subr.mxu0 0.0
    %411 = vmatpush2.msra.mxu0 0.0
    %412 = vmatprep.subr.mxu0 0.0
    %413 = vmatpush2.msra.mxu0 0.0
    %414 = vmatprep.subr.mxu0 0.0
    %415 = vmatpush2.msra.mxu0 0.0
    %416 = vmatprep.subr.mxu0 0.0
    %417 = vmatpush2.msra.mxu0 0.0
    %418 = vmatprep.subr.mxu0 0.0
    %419 = vmatpush2.msra.mxu0 0.0
    %420 = vmatprep.subr.mxu0 0.0
    %421 = vmatpush2.msra.mxu0 0.0
    %422 = vmatprep.mubr.f32.mxu0 0.0
    %423 = vmatmul.mubr.f32.gmra.mxu0 %v356
    %v424 = vpop.f32.mrf.mxu0
    %v425 = vadd.f32 0.0, %v424
    %v426 = vpop.f32.mrf.mxu0
    %427 = vdwg.mxu0
    %v429 = vrot.slane %v425, 6
    %v431 = vadd.f32 %v247, %v429
    %v432 = vxor.u32 %v431, 2147483648
    %v433 = vmul.f32 %v432, 1.442695
    %v434 = vpow.pop %v433
    %v435 = vadd.f32 %v434, 1.0
    %v436 = vrcp.pop %v435
    %v437 = vmul.f32 1.0, %v436
    %v438 = vtanh.pop %v431
    %v439 = vrot.slane %v354, 6
    %440 = vrot.lane.b32.xlu0 %v439, 64
    %v441 = vpop.permute.xlu0 %440
    %v443 = vsub.f32 %v438, %v441
    %445 = vrot.lane.b32.xlu0 %v443, 64
    %v446 = vpop.permute.xlu0 %445
    %v448 = vmul.f32 %v437, %v446
    %v450 = vrot.slane %v448, 2
    %v452 = vadd.f32 %v354, %v450
    %v454 = vsel %vm244, %v452, 0
    %456 = vmatprep.subr.mxu0 0.0
    %457 = vmatpush1.msra.mxu0 0.0
    %458 = vmatprep.subr.mxu0 0.0
    %459 = vmatpush1.msra.mxu0 0.0
    %460 = vmatprep.subr.mxu0 0.0
    %461 = vmatpush1.msra.mxu0 0.0
    %462 = vmatprep.subr.mxu0 0.0
    %463 = vmatpush1.msra.mxu0 0.0
    %464 = vmatprep.subr.mxu0 0.0
    %465 = vmatpush1.msra.mxu0 0.0
    %466 = vmatprep.subr.mxu0 0.0
    %467 = vmatpush1.msra.mxu0 0.0
    %468 = vmatprep.subr.mxu0 0.0
    %469 = vmatpush1.msra.mxu0 0.0
    %470 = vmatprep.subr.mxu0 0.0
    %471 = vmatpush1.msra.mxu0 0.0
    %472 = vmatprep.subr.mxu0 0.0
    %473 = vmatpush1.msra.mxu0 %v35
    %474 = vmatprep.subr.mxu0 0.0
    %475 = vmatpush1.msra.mxu0 %v34
    %476 = vmatprep.subr.mxu0 0.0
    %477 = vmatpush1.msra.mxu0 %v33
    %478 = vmatprep.subr.mxu0 0.0
    %479 = vmatpush1.msra.mxu0 %v32
    %480 = vmatprep.subr.mxu0 0.0
    %481 = vmatpush1.msra.mxu0 %v31
    %482 = vmatprep.subr.mxu0 0.0
    %483 = vmatpush1.msra.mxu0 %v30
    %484 = vmatprep.subr.mxu0 0.0
    %485 = vmatpush1.msra.mxu0 %v29
    %486 = vmatprep.subr.mxu0 0.0
    %487 = vmatpush1.msra.mxu0 %v28
    %488 = vmatprep.subr.mxu0 0.0
    %489 = vmatpush2.msra.mxu0 0.0
    %490 = vmatprep.subr.mxu0 0.0
    %491 = vmatpush2.msra.mxu0 0.0
    %492 = vmatprep.subr.mxu0 0.0
    %493 = vmatpush2.msra.mxu0 0.0
    %494 = vmatprep.subr.mxu0 0.0
    %495 = vmatpush2.msra.mxu0 0.0
    %496 = vmatprep.subr.mxu0 0.0
    %497 = vmatpush2.msra.mxu0 0.0
    %498 = vmatprep.subr.mxu0 0.0
    %499 = vmatpush2.msra.mxu0 0.0
    %500 = vmatprep.subr.mxu0 0.0
    %501 = vmatpush2.msra.mxu0 0.0
    %502 = vmatprep.subr.mxu0 0.0
    %503 = vmatpush2.msra.mxu0 0.0
    %504 = vmatprep.subr.mxu0 0.0
    %505 = vmatpush2.msra.mxu0 0.0
    %506 = vmatprep.subr.mxu0 0.0
    %507 = vmatpush2.msra.mxu0 0.0
    %508 = vmatprep.subr.mxu0 0.0
    %509 = vmatpush2.msra.mxu0 0.0
    %510 = vmatprep.subr.mxu0 0.0
    %511 = vmatpush2.msra.mxu0 0.0
    %512 = vmatprep.subr.mxu0 0.0
    %513 = vmatpush2.msra.mxu0 0.0
    %514 = vmatprep.subr.mxu0 0.0
    %515 = vmatpush2.msra.mxu0 0.0
    %516 = vmatprep.subr.mxu0 0.0
    %517 = vmatpush2.msra.mxu0 0.0
    %518 = vmatprep.subr.mxu0 0.0
    %519 = vmatpush2.msra.mxu0 0.0
    %520 = vmatprep.mubr.f32.mxu0 0.0
    %521 = vmatmul.mubr.f32.gmra.mxu0 %v454
    %v522 = vpop.f32.mrf.mxu0
    %v523 = vadd.f32 0.0, %v522
    %v524 = vpop.f32.mrf.mxu0
    %525 = vdwg.mxu0
    %v527 = vrot.slane %v523, 4
    %v529 = vadd.f32 %v247, %v527
    %v530 = vxor.u32 %v529, 2147483648
    %v531 = vmul.f32 %v530, 1.442695
    %v532 = vpow.pop %v531
    %v533 = vadd.f32 %v532, 1.0
    %v534 = vrcp.pop %v533
    %v535 = vmul.f32 1.0, %v534
    %v536 = vtanh.pop %v529
    %v537 = vrot.slane %v452, 4
    %538 = vrot.lane.b32.xlu0 %v537, 64
    %v539 = vpop.permute.xlu0 %538
    %v541 = vsub.f32 %v536, %v539
    %543 = vrot.lane.b32.xlu0 %v541, 64
    %v544 = vpop.permute.xlu0 %543
    %v546 = vmul.f32 %v535, %v544
    %v548 = vrot.slane %v546, 4
    %v550 = vadd.f32 %v452, %v548
    %v552 = vsel %vm244, %v550, 0
    %554 = vmatprep.subr.mxu0 0.0
    %555 = vmatpush1.msra.mxu0 0.0
    %556 = vmatprep.subr.mxu0 0.0
    %557 = vmatpush1.msra.mxu0 0.0
    %558 = vmatprep.subr.mxu0 0.0
    %559 = vmatpush1.msra.mxu0 0.0
    %560 = vmatprep.subr.mxu0 0.0
    %561 = vmatpush1.msra.mxu0 0.0
    %562 = vmatprep.subr.mxu0 0.0
    %563 = vmatpush1.msra.mxu0 0.0
    %564 = vmatprep.subr.mxu0 0.0
    %565 = vmatpush1.msra.mxu0 0.0
    %566 = vmatprep.subr.mxu0 0.0
    %567 = vmatpush1.msra.mxu0 0.0
    %568 = vmatprep.subr.mxu0 0.0
    %569 = vmatpush1.msra.mxu0 0.0
    %570 = vmatprep.subr.mxu0 0.0
    %571 = vmatpush1.msra.mxu0 %v35
    %572 = vmatprep.subr.mxu0 0.0
    %573 = vmatpush1.msra.mxu0 %v34
    %574 = vmatprep.subr.mxu0 0.0
    %575 = vmatpush1.msra.mxu0 %v33
    %576 = vmatprep.subr.mxu0 0.0
    %577 = vmatpush1.msra.mxu0 %v32
    %578 = vmatprep.subr.mxu0 0.0
    %579 = vmatpush1.msra.mxu0 %v31
    %580 = vmatprep.subr.mxu0 0.0
    %581 = vmatpush1.msra.mxu0 %v30
    %582 = vmatprep.subr.mxu0 0.0
    %583 = vmatpush1.msra.mxu0 %v29
    %584 = vmatprep.subr.mxu0 0.0
    %585 = vmatpush1.msra.mxu0 %v28
    %586 = vmatprep.subr.mxu0 0.0
    %587 = vmatpush2.msra.mxu0 0.0
    %588 = vmatprep.subr.mxu0 0.0
    %589 = vmatpush2.msra.mxu0 0.0
    %590 = vmatprep.subr.mxu0 0.0
    %591 = vmatpush2.msra.mxu0 0.0
    %592 = vmatprep.subr.mxu0 0.0
    %593 = vmatpush2.msra.mxu0 0.0
    %594 = vmatprep.subr.mxu0 0.0
    %595 = vmatpush2.msra.mxu0 0.0
    %596 = vmatprep.subr.mxu0 0.0
    %597 = vmatpush2.msra.mxu0 0.0
    %598 = vmatprep.subr.mxu0 0.0
    %599 = vmatpush2.msra.mxu0 0.0
    %600 = vmatprep.subr.mxu0 0.0
    %601 = vmatpush2.msra.mxu0 0.0
    %602 = vmatprep.subr.mxu0 0.0
    %603 = vmatpush2.msra.mxu0 0.0
    %604 = vmatprep.subr.mxu0 0.0
    %605 = vmatpush2.msra.mxu0 0.0
    %606 = vmatprep.subr.mxu0 0.0
    %607 = vmatpush2.msra.mxu0 0.0
    %608 = vmatprep.subr.mxu0 0.0
    %609 = vmatpush2.msra.mxu0 0.0
    %610 = vmatprep.subr.mxu0 0.0
    %611 = vmatpush2.msra.mxu0 0.0
    %612 = vmatprep.subr.mxu0 0.0
    %613 = vmatpush2.msra.mxu0 0.0
    %614 = vmatprep.subr.mxu0 0.0
    %615 = vmatpush2.msra.mxu0 0.0
    %616 = vmatprep.subr.mxu0 0.0
    %617 = vmatpush2.msra.mxu0 0.0
    %618 = vmatprep.mubr.f32.mxu0 0.0
    %619 = vmatmul.mubr.f32.gmra.mxu0 %v552
    %v620 = vpop.f32.mrf.mxu0
    %v621 = vadd.f32 0.0, %v620
    %v622 = vpop.f32.mrf.mxu0
    %623 = vdwg.mxu0
    %v625 = vrot.slane %v621, 2
    %v627 = vadd.f32 %v247, %v625
    %v628 = vxor.u32 %v627, 2147483648
    %v629 = vmul.f32 %v628, 1.442695
    %v630 = vpow.pop %v629
    %v631 = vadd.f32 %v630, 1.0
    %v632 = vrcp.pop %v631
    %v633 = vmul.f32 1.0, %v632
    %v634 = vtanh.pop %v627
    %v635 = vrot.slane %v550, 2
    %636 = vrot.lane.b32.xlu0 %v635, 64
    %v637 = vpop.permute.xlu0 %636
    %v639 = vsub.f32 %v634, %v637
    %641 = vrot.lane.b32.xlu0 %v639, 64
    %v642 = vpop.permute.xlu0 %641
    %v644 = vmul.f32 %v633, %v642
    %v646 = vrot.slane %v644, 6
    %v648 = vadd.f32 %v550, %v646
    %v650 = vsel %vm244, %v648, 0
    %652 = vmatprep.subr.mxu0 0.0
    %653 = vmatpush1.msra.mxu0 0.0
    %654 = vmatprep.subr.mxu0 0.0
    %655 = vmatpush1.msra.mxu0 0.0
    %656 = vmatprep.subr.mxu0 0.0
    %657 = vmatpush1.msra.mxu0 0.0
    %658 = vmatprep.subr.mxu0 0.0
    %659 = vmatpush1.msra.mxu0 0.0
    %660 = vmatprep.subr.mxu0 0.0
    %661 = vmatpush1.msra.mxu0 0.0
    %662 = vmatprep.subr.mxu0 0.0
    %663 = vmatpush1.msra.mxu0 0.0
    %664 = vmatprep.subr.mxu0 0.0
    %665 = vmatpush1.msra.mxu0 0.0
    %666 = vmatprep.subr.mxu0 0.0
    %667 = vmatpush1.msra.mxu0 0.0
    %668 = vmatprep.subr.mxu0 0.0
    %669 = vmatpush1.msra.mxu0 %v35
    %670 = vmatprep.subr.mxu0 0.0
    %671 = vmatpush1.msra.mxu0 %v34
    %672 = vmatprep.subr.mxu0 0.0
    %673 = vmatpush1.msra.mxu0 %v33
    %674 = vmatprep.subr.mxu0 0.0
    %675 = vmatpush1.msra.mxu0 %v32
    %676 = vmatprep.subr.mxu0 0.0
    %677 = vmatpush1.msra.mxu0 %v31
    %678 = vmatprep.subr.mxu0 0.0
    %679 = vmatpush1.msra.mxu0 %v30
    %680 = vmatprep.subr.mxu0 0.0
    %681 = vmatpush1.msra.mxu0 %v29
    %682 = vmatprep.subr.mxu0 0.0
    %683 = vmatpush1.msra.mxu0 %v28
    %684 = vmatprep.subr.mxu0 0.0
    %685 = vmatpush2.msra.mxu0 0.0
    %686 = vmatprep.subr.mxu0 0.0
    %687 = vmatpush2.msra.mxu0 0.0
    %688 = vmatprep.subr.mxu0 0.0
    %689 = vmatpush2.msra.mxu0 0.0
    %690 = vmatprep.subr.mxu0 0.0
    %691 = vmatpush2.msra.mxu0 0.0
    %692 = vmatprep.subr.mxu0 0.0
    %693 = vmatpush2.msra.mxu0 0.0
    %694 = vmatprep.subr.mxu0 0.0
    %695 = vmatpush2.msra.mxu0 0.0
    %696 = vmatprep.subr.mxu0 0.0
    %697 = vmatpush2.msra.mxu0 0.0
    %698 = vmatprep.subr.mxu0 0.0
    %699 = vmatpush2.msra.mxu0 0.0
    %700 = vmatprep.subr.mxu0 0.0
    %701 = vmatpush2.msra.mxu0 0.0
    %702 = vmatprep.subr.mxu0 0.0
    %703 = vmatpush2.msra.mxu0 0.0
    %704 = vmatprep.subr.mxu0 0.0
    %705 = vmatpush2.msra.mxu0 0.0
    %706 = vmatprep.subr.mxu0 0.0
    %707 = vmatpush2.msra.mxu0 0.0
    %708 = vmatprep.subr.mxu0 0.0
    %709 = vmatpush2.msra.mxu0 0.0
    %710 = vmatprep.subr.mxu0 0.0
    %711 = vmatpush2.msra.mxu0 0.0
    %712 = vmatprep.subr.mxu0 0.0
    %713 = vmatpush2.msra.mxu0 0.0
    %714 = vmatprep.subr.mxu0 0.0
    %715 = vmatpush2.msra.mxu0 0.0
    %716 = vmatprep.mubr.f32.mxu0 0.0
    %717 = vmatmul.mubr.f32.gmra.mxu0 %v650
    %v718 = vpop.f32.mrf.mxu0
    %v719 = vadd.f32 0.0, %v718
    %v720 = vpop.f32.mrf.mxu0
    %721 = vdwg.mxu0
    %v722 = vadd.f32 %v261, %v719
    %v723 = vxor.u32 %v722, 2147483648
    %v724 = vmul.f32 %v723, 1.442695
    %v725 = vpow.pop %v724
    %v726 = vadd.f32 %v725, 1.0
    %v727 = vrcp.pop %v726
    %v728 = vmul.f32 1.0, %v727
    %v729 = vtanh.pop %v722
    %730 = vrot.lane.b32.xlu0 %v648, 64
    %v731 = vpop.permute.xlu0 %730
    %v733 = vsub.f32 %v729, %v731
    %735 = vrot.lane.b32.xlu0 %v733, 64
    %v736 = vpop.permute.xlu0 %735
    %v738 = vmul.f32 %v728, %v736
    %v739 = vadd.f32 %v648, %v738
    %v741 = vsel %vm244, %v739, 0
    %743 = vmatprep.subr.mxu0 0.0
    %744 = vmatpush1.msra.mxu0 0.0
    %745 = vmatprep.subr.mxu0 0.0
    %746 = vmatpush1.msra.mxu0 0.0
    %747 = vmatprep.subr.mxu0 0.0
    %748 = vmatpush1.msra.mxu0 0.0
    %749 = vmatprep.subr.mxu0 0.0
    %750 = vmatpush1.msra.mxu0 0.0
    %751 = vmatprep.subr.mxu0 0.0
    %752 = vmatpush1.msra.mxu0 0.0
    %753 = vmatprep.subr.mxu0 0.0
    %754 = vmatpush1.msra.mxu0 0.0
    %755 = vmatprep.subr.mxu0 0.0
    %756 = vmatpush1.msra.mxu0 0.0
    %757 = vmatprep.subr.mxu0 0.0
    %758 = vmatpush1.msra.mxu0 0.0
    %759 = vmatprep.subr.mxu0 0.0
    %760 = vmatpush1.msra.mxu0 %v35
    %761 = vmatprep.subr.mxu0 0.0
    %762 = vmatpush1.msra.mxu0 %v34
    %763 = vmatprep.subr.mxu0 0.0
    %764 = vmatpush1.msra.mxu0 %v33
    %765 = vmatprep.subr.mxu0 0.0
    %766 = vmatpush1.msra.mxu0 %v32
    %767 = vmatprep.subr.mxu0 0.0
    %768 = vmatpush1.msra.mxu0 %v31
    %769 = vmatprep.subr.mxu0 0.0
    %770 = vmatpush1.msra.mxu0 %v30
    %771 = vmatprep.subr.mxu0 0.0
    %772 = vmatpush1.msra.mxu0 %v29
    %773 = vmatprep.subr.mxu0 0.0
    %774 = vmatpush1.msra.mxu0 %v28
    %775 = vmatprep.subr.mxu0 0.0
    %776 = vmatpush2.msra.mxu0 0.0
    %777 = vmatprep.subr.mxu0 0.0
    %778 = vmatpush2.msra.mxu0 0.0
    %779 = vmatprep.subr.mxu0 0.0
    %780 = vmatpush2.msra.mxu0 0.0
    %781 = vmatprep.subr.mxu0 0.0
    %782 = vmatpush2.msra.mxu0 0.0
    %783 = vmatprep.subr.mxu0 0.0
    %784 = vmatpush2.msra.mxu0 0.0
    %785 = vmatprep.subr.mxu0 0.0
    %786 = vmatpush2.msra.mxu0 0.0
    %787 = vmatprep.subr.mxu0 0.0
    %788 = vmatpush2.msra.mxu0 0.0
    %789 = vmatprep.subr.mxu0 0.0
    %790 = vmatpush2.msra.mxu0 0.0
    %791 = vmatprep.subr.mxu0 0.0
    %792 = vmatpush2.msra.mxu0 0.0
    %793 = vmatprep.subr.mxu0 0.0
    %794 = vmatpush2.msra.mxu0 0.0
    %795 = vmatprep.subr.mxu0 0.0
    %796 = vmatpush2.msra.mxu0 0.0
    %797 = vmatprep.subr.mxu0 0.0
    %798 = vmatpush2.msra.mxu0 0.0
    %799 = vmatprep.subr.mxu0 0.0
    %800 = vmatpush2.msra.mxu0 0.0
    %801 = vmatprep.subr.mxu0 0.0
    %802 = vmatpush2.msra.mxu0 0.0
    %803 = vmatprep.subr.mxu0 0.0
    %804 = vmatpush2.msra.mxu0 0.0
    %805 = vmatprep.subr.mxu0 0.0
    %806 = vmatpush2.msra.mxu0 0.0
    %807 = vmatprep.mubr.f32.mxu0 0.0
    %808 = vmatmul.mubr.f32.gmra.mxu0 %v741
    %v809 = vpop.f32.mrf.mxu0
    %v810 = vadd.f32 0.0, %v809
    %v811 = vpop.f32.mrf.mxu0
    %812 = vdwg.mxu0
    %v814 = vrot.slane %v810, 6
    %v816 = vadd.f32 %v264, %v814
    %v817 = vxor.u32 %v816, 2147483648
    %v818 = vmul.f32 %v817, 1.442695
    %v819 = vpow.pop %v818
    %v820 = vadd.f32 %v819, 1.0
    %v821 = vrcp.pop %v820
    %v822 = vmul.f32 1.0, %v821
    %v823 = vtanh.pop %v816
    %v824 = vrot.slane %v739, 6
    %825 = vrot.lane.b32.xlu0 %v824, 64
    %v826 = vpop.permute.xlu0 %825
    %v828 = vsub.f32 %v823, %v826
    %830 = vrot.lane.b32.xlu0 %v828, 64
    %v831 = vpop.permute.xlu0 %830
    %v833 = vmul.f32 %v822, %v831
    %v835 = vrot.slane %v833, 2
    %v837 = vadd.f32 %v739, %v835
    %v838 = vsel %vm267, %v837, %v739
    %v840 = vsel %vm244, %v838, 0
    %842 = vmatprep.subr.mxu0 0.0
    %843 = vmatpush1.msra.mxu0 0.0
    %844 = vmatprep.subr.mxu0 0.0
    %845 = vmatpush1.msra.mxu0 0.0
    %846 = vmatprep.subr.mxu0 0.0
    %847 = vmatpush1.msra.mxu0 0.0
    %848 = vmatprep.subr.mxu0 0.0
    %849 = vmatpush1.msra.mxu0 0.0
    %850 = vmatprep.subr.mxu0 0.0
    %851 = vmatpush1.msra.mxu0 0.0
    %852 = vmatprep.subr.mxu0 0.0
    %853 = vmatpush1.msra.mxu0 0.0
    %854 = vmatprep.subr.mxu0 0.0
    %855 = vmatpush1.msra.mxu0 0.0
    %856 = vmatprep.subr.mxu0 0.0
    %857 = vmatpush1.msra.mxu0 0.0
    %858 = vmatprep.subr.mxu0 0.0
    %859 = vmatpush1.msra.mxu0 %v35
    %860 = vmatprep.subr.mxu0 0.0
    %861 = vmatpush1.msra.mxu0 %v34
    %862 = vmatprep.subr.mxu0 0.0
    %863 = vmatpush1.msra.mxu0 %v33
    %864 = vmatprep.subr.mxu0 0.0
    %865 = vmatpush1.msra.mxu0 %v32
    %866 = vmatprep.subr.mxu0 0.0
    %867 = vmatpush1.msra.mxu0 %v31
    %868 = vmatprep.subr.mxu0 0.0
    %869 = vmatpush1.msra.mxu0 %v30
    %870 = vmatprep.subr.mxu0 0.0
    %871 = vmatpush1.msra.mxu0 %v29
    %872 = vmatprep.subr.mxu0 0.0
    %873 = vmatpush1.msra.mxu0 %v28
    %874 = vmatprep.subr.mxu0 0.0
    %875 = vmatpush2.msra.mxu0 0.0
    %876 = vmatprep.subr.mxu0 0.0
    %877 = vmatpush2.msra.mxu0 0.0
    %878 = vmatprep.subr.mxu0 0.0
    %879 = vmatpush2.msra.mxu0 0.0
    %880 = vmatprep.subr.mxu0 0.0
    %881 = vmatpush2.msra.mxu0 0.0
    %882 = vmatprep.subr.mxu0 0.0
    %883 = vmatpush2.msra.mxu0 0.0
    %884 = vmatprep.subr.mxu0 0.0
    %885 = vmatpush2.msra.mxu0 0.0
    %886 = vmatprep.subr.mxu0 0.0
    %887 = vmatpush2.msra.mxu0 0.0
    %888 = vmatprep.subr.mxu0 0.0
    %889 = vmatpush2.msra.mxu0 0.0
    %890 = vmatprep.subr.mxu0 0.0
    %891 = vmatpush2.msra.mxu0 0.0
    %892 = vmatprep.subr.mxu0 0.0
    %893 = vmatpush2.msra.mxu0 0.0
    %894 = vmatprep.subr.mxu0 0.0
    %895 = vmatpush2.msra.mxu0 0.0
    %896 = vmatprep.subr.mxu0 0.0
    %897 = vmatpush2.msra.mxu0 0.0
    %898 = vmatprep.subr.mxu0 0.0
    %899 = vmatpush2.msra.mxu0 0.0
    %900 = vmatprep.subr.mxu0 0.0
    %901 = vmatpush2.msra.mxu0 0.0
    %902 = vmatprep.subr.mxu0 0.0
    %903 = vmatpush2.msra.mxu0 0.0
    %904 = vmatprep.subr.mxu0 0.0
    %905 = vmatpush2.msra.mxu0 0.0
    %906 = vmatprep.mubr.f32.mxu0 0.0
    %907 = vmatmul.mubr.f32.gmra.mxu0 %v840
    %v908 = vpop.f32.mrf.mxu0
    %v909 = vadd.f32 0.0, %v908
    %v910 = vpop.f32.mrf.mxu0
    %911 = vdwg.mxu0
    %v913 = vrot.slane %v909, 4
    %v915 = vadd.f32 %v264, %v913
    %v916 = vxor.u32 %v915, 2147483648
    %v917 = vmul.f32 %v916, 1.442695
    %v918 = vpow.pop %v917
    %v919 = vadd.f32 %v918, 1.0
    %v920 = vrcp.pop %v919
    %v921 = vmul.f32 1.0, %v920
    %v922 = vtanh.pop %v915
    %v923 = vrot.slane %v838, 4
    %924 = vrot.lane.b32.xlu0 %v923, 64
    %v925 = vpop.permute.xlu0 %924
    %v927 = vsub.f32 %v922, %v925
    %929 = vrot.lane.b32.xlu0 %v927, 64
    %v930 = vpop.permute.xlu0 %929
    %v932 = vmul.f32 %v921, %v930
    %v934 = vrot.slane %v932, 4
    %v936 = vadd.f32 %v838, %v934
    %v937 = vsel %vm267, %v936, %v739
    %v939 = vsel %vm244, %v937, 0
    %941 = vmatprep.subr.mxu0 0.0
    %942 = vmatpush1.msra.mxu0 0.0
    %943 = vmatprep.subr.mxu0 0.0
    %944 = vmatpush1.msra.mxu0 0.0
    %945 = vmatprep.subr.mxu0 0.0
    %946 = vmatpush1.msra.mxu0 0.0
    %947 = vmatprep.subr.mxu0 0.0
    %948 = vmatpush1.msra.mxu0 0.0
    %949 = vmatprep.subr.mxu0 0.0
    %950 = vmatpush1.msra.mxu0 0.0
    %951 = vmatprep.subr.mxu0 0.0
    %952 = vmatpush1.msra.mxu0 0.0
    %953 = vmatprep.subr.mxu0 0.0
    %954 = vmatpush1.msra.mxu0 0.0
    %955 = vmatprep.subr.mxu0 0.0
    %956 = vmatpush1.msra.mxu0 0.0
    %957 = vmatprep.subr.mxu0 0.0
    %958 = vmatpush1.msra.mxu0 %v35
    %959 = vmatprep.subr.mxu0 0.0
    %960 = vmatpush1.msra.mxu0 %v34
    %961 = vmatprep.subr.mxu0 0.0
    %962 = vmatpush1.msra.mxu0 %v33
    %963 = vmatprep.subr.mxu0 0.0
    %964 = vmatpush1.msra.mxu0 %v32
    %965 = vmatprep.subr.mxu0 0.0
    %966 = vmatpush1.msra.mxu0 %v31
    %967 = vmatprep.subr.mxu0 0.0
    %968 = vmatpush1.msra.mxu0 %v30
    %969 = vmatprep.subr.mxu0 0.0
    %970 = vmatpush1.msra.mxu0 %v29
    %971 = vmatprep.subr.mxu0 0.0
    %972 = vmatpush1.msra.mxu0 %v28
    %973 = vmatprep.subr.mxu0 0.0
    %974 = vmatpush2.msra.mxu0 0.0
    %975 = vmatprep.subr.mxu0 0.0
    %976 = vmatpush2.msra.mxu0 0.0
    %977 = vmatprep.subr.mxu0 0.0
    %978 = vmatpush2.msra.mxu0 0.0
    %979 = vmatprep.subr.mxu0 0.0
    %980 = vmatpush2.msra.mxu0 0.0
    %981 = vmatprep.subr.mxu0 0.0
    %982 = vmatpush2.msra.mxu0 0.0
    %983 = vmatprep.subr.mxu0 0.0
    %984 = vmatpush2.msra.mxu0 0.0
    %985 = vmatprep.subr.mxu0 0.0
    %986 = vmatpush2.msra.mxu0 0.0
    %987 = vmatprep.subr.mxu0 0.0
    %988 = vmatpush2.msra.mxu0 0.0
    %989 = vmatprep.subr.mxu0 0.0
    %990 = vmatpush2.msra.mxu0 0.0
    %991 = vmatprep.subr.mxu0 0.0
    %992 = vmatpush2.msra.mxu0 0.0
    %993 = vmatprep.subr.mxu0 0.0
    %994 = vmatpush2.msra.mxu0 0.0
    %995 = vmatprep.subr.mxu0 0.0
    %996 = vmatpush2.msra.mxu0 0.0
    %997 = vmatprep.subr.mxu0 0.0
    %998 = vmatpush2.msra.mxu0 0.0
    %999 = vmatprep.subr.mxu0 0.0
    %1000 = vmatpush2.msra.mxu0 0.0
    %1001 = vmatprep.subr.mxu0 0.0
    %1002 = vmatpush2.msra.mxu0 0.0
    %1003 = vmatprep.subr.mxu0 0.0
    %1004 = vmatpush2.msra.mxu0 0.0
    %1005 = vmatprep.mubr.f32.mxu0 0.0
    %1006 = vmatmul.mubr.f32.gmra.mxu0 %v939
    %v1007 = vpop.f32.mrf.mxu0
    %v1008 = vadd.f32 0.0, %v1007
    %v1009 = vpop.f32.mrf.mxu0
    %1010 = vdwg.mxu0
    %v1012 = vrot.slane %v1008, 2
    %v1014 = vadd.f32 %v264, %v1012
    %v1015 = vxor.u32 %v1014, 2147483648
    %v1016 = vmul.f32 %v1015, 1.442695
    %v1017 = vpow.pop %v1016
    %v1018 = vadd.f32 %v1017, 1.0
    %v1019 = vrcp.pop %v1018
    %v1020 = vmul.f32 1.0, %v1019
    %v1021 = vtanh.pop %v1014
    %v1022 = vrot.slane %v937, 2
    %1023 = vrot.lane.b32.xlu0 %v1022, 64
    %v1024 = vpop.permute.xlu0 %1023
    %v1026 = vsub.f32 %v1021, %v1024
    %1028 = vrot.lane.b32.xlu0 %v1026, 64
    %v1029 = vpop.permute.xlu0 %1028
    %v1031 = vmul.f32 %v1020, %v1029
    %v1033 = vrot.slane %v1031, 6
    %v1035 = vadd.f32 %v937, %v1033
    %v1036 = vsel %vm267, %v1035, %v739
    %v1037 = vrot.slane %v452, 6
    %v1039 = vrot.slane %v550, 4
    %v1041 = vrot.slane %v648, 2
    %v1043 = vrot.slane %v838, 6
    %v1045 = vrot.slane %v937, 4
    %v1048 = vrot.slane %v1036, 2
    %vm1050 = vcmask 1041408
    %v1051 = vsel %vm1050, %v354, %v1037
    %vm1052 = vcmask 1043456
    %v1053 = vsel %vm1052, %v1051, %v1039
    %vm1054 = vcmask 1045504
    %v1055 = vsel %vm1054, %v1053, %v1041
    %v1056 = vsel %vm1050, %v739, %v1043
    %v1057 = vsel %vm1052, %v1056, %v1045
    %v1058 = vsel %vm1054, %v1057, %v1048
    %v1059 = vlaneseq
    %v1060 = vshrl.u32 %v1059, 7
    %v1061 = vsub.s32 0, %v1060
    %v1062 = vrot.slane %v40, %v1061
    %v1064 = vsel %vm63, %v1055, 0
    %v1067 = vsel %vm63, %v1058, 0
    %1069 = vmatprep.subr.mxu0 0.0
    %1070 = vmatpush1.msra.mxu0 0.0
    %1071 = vmatprep.subr.mxu0 0.0
    %1072 = vmatpush1.msra.mxu0 0.0
    %1073 = vmatprep.subr.mxu0 0.0
    %1074 = vmatpush1.msra.mxu0 0.0
    %1075 = vmatprep.subr.mxu0 0.0
    %1076 = vmatpush1.msra.mxu0 0.0
    %1077 = vmatprep.subr.mxu0 0.0
    %1078 = vmatpush1.msra.mxu0 0.0
    %1079 = vmatprep.subr.mxu0 0.0
    %1080 = vmatpush1.msra.mxu0 0.0
    %1081 = vmatprep.subr.mxu0 0.0
    %1082 = vmatpush1.msra.mxu0 0.0
    %1083 = vmatprep.subr.mxu0 0.0
    %1084 = vmatpush1.msra.mxu0 0.0
    %1085 = vmatprep.subr.mxu0 0.0
    %1086 = vmatpush1.msra.mxu0 0.0
    %1087 = vmatprep.subr.mxu0 0.0
    %1088 = vmatpush1.msra.mxu0 0.0
    %1089 = vmatprep.subr.mxu0 0.0
    %1090 = vmatpush1.msra.mxu0 0.0
    %1091 = vmatprep.subr.mxu0 0.0
    %1092 = vmatpush1.msra.mxu0 0.0
    %1093 = vmatprep.subr.mxu0 0.0
    %1094 = vmatpush1.msra.mxu0 %v39
    %1095 = vmatprep.subr.mxu0 0.0
    %1096 = vmatpush1.msra.mxu0 %v38
    %1097 = vmatprep.subr.mxu0 0.0
    %1098 = vmatpush1.msra.mxu0 %v37
    %1099 = vmatprep.subr.mxu0 0.0
    %1100 = vmatpush1.msra.mxu0 %v36
    %1101 = vmatprep.subr.mxu0 0.0
    %1102 = vmatpush2.msra.mxu0 0.0
    %1103 = vmatprep.subr.mxu0 0.0
    %1104 = vmatpush2.msra.mxu0 0.0
    %1105 = vmatprep.subr.mxu0 0.0
    %1106 = vmatpush2.msra.mxu0 0.0
    %1107 = vmatprep.subr.mxu0 0.0
    %1108 = vmatpush2.msra.mxu0 0.0
    %1109 = vmatprep.subr.mxu0 0.0
    %1110 = vmatpush2.msra.mxu0 0.0
    %1111 = vmatprep.subr.mxu0 0.0
    %1112 = vmatpush2.msra.mxu0 0.0
    %1113 = vmatprep.subr.mxu0 0.0
    %1114 = vmatpush2.msra.mxu0 0.0
    %1115 = vmatprep.subr.mxu0 0.0
    %1116 = vmatpush2.msra.mxu0 0.0
    %1117 = vmatprep.subr.mxu0 0.0
    %1118 = vmatpush2.msra.mxu0 0.0
    %1119 = vmatprep.subr.mxu0 0.0
    %1120 = vmatpush2.msra.mxu0 0.0
    %1121 = vmatprep.subr.mxu0 0.0
    %1122 = vmatpush2.msra.mxu0 0.0
    %1123 = vmatprep.subr.mxu0 0.0
    %1124 = vmatpush2.msra.mxu0 0.0
    %1125 = vmatprep.subr.mxu0 0.0
    %1126 = vmatpush2.msra.mxu0 0.0
    %1127 = vmatprep.subr.mxu0 0.0
    %1128 = vmatpush2.msra.mxu0 0.0
    %1129 = vmatprep.subr.mxu0 0.0
    %1130 = vmatpush2.msra.mxu0 0.0
    %1131 = vmatprep.subr.mxu0 0.0
    %1132 = vmatpush2.msra.mxu0 0.0
    %1133 = vmatprep.mubr.f32.mxu0 0.0
    %1134 = vmatmul.mubr.f32.gmra.mxu0 %v1064
    %v1135 = vpop.f32.mrf.mxu0
    %v1136 = vadd.f32 %v1062, %v1135
    %v1137 = vpop.f32.mrf.mxu0
    %1138 = vmatprep.mubr.f32.mxu0 0.0
    %1139 = vmatmul.mubr.f32.gmra.mxu0 %v1067
    %v1140 = vpop.f32.mrf.mxu0
    %v1141 = vadd.f32 %v1062, %v1140
    %v1142 = vpop.f32.mrf.mxu0
    %1143 = vdwg.mxu0
    %v1144 = vtanh.pop %v1136
    %v1145 = vtanh.pop %v1141
    %v1146 = vlaneseq
    %v1147 = vshrl.u32 %v1146, 7
    %v1148 = vsub.s32 0, %v1147
    %v1149 = vrot.slane %v41, %v1148
    %v1150 = vmul.f32 %v1144, %v1149
    %v1151 = vmul.f32 %v1145, %v1149
    %v1152 = vsel %vm63, %v1150, 0.0
    %1153 = vadd.xlane.f32.xlu0 %v1152
    %v1154 = vpop.xlane.xlu0 %1153
    %v1155 = vsel %vm63, %v1151, 0.0
    %1156 = vadd.xlane.f32.xlu0 %v1155
    %v1157 = vpop.xlane.xlu0 %1156
    %v1158 = vlaneseq
    %v1159 = vshrl.u32 %v1158, 7
    %v1160 = vsub.s32 0, %v1159
    %v1161 = vrot.slane %v42, %v1160
    %v1162 = vadd.f32 %v1154, %v1161
    %v1163 = vadd.f32 %v1157, %v1161
    %v1165 = vrot.slane %v1162, 2
    %1166 = vrot.lane.b32.xlu0 %v1165, 1
    %v1167 = vpop.permute.xlu0 %1166
    %v1169 = vrot.slane %v1162, 4
    %1170 = vrot.lane.b32.xlu0 %v1169, 2
    %v1171 = vpop.permute.xlu0 %1170
    %v1173 = vrot.slane %v1162, 6
    %1174 = vrot.lane.b32.xlu0 %v1173, 3
    %v1175 = vpop.permute.xlu0 %1174
    %1178 = vrot.lane.b32.xlu0 %v1163, 4
    %v1179 = vpop.permute.xlu0 %1178
    %v1181 = vrot.slane %v1163, 2
    %1182 = vrot.lane.b32.xlu0 %v1181, 5
    %v1183 = vpop.permute.xlu0 %1182
    %v1185 = vrot.slane %v1163, 4
    %1186 = vrot.lane.b32.xlu0 %v1185, 6
    %v1187 = vpop.permute.xlu0 %1186
    %v1189 = vrot.slane %v1163, 6
    %1190 = vrot.lane.b32.xlu0 %v1189, 7
    %v1191 = vpop.permute.xlu0 %1190
    %vm1193 = vcmask 7168
    %v1194 = vsel %vm1193, %v1162, %v1167
    %vm1195 = vcmask 15360
    %v1196 = vsel %vm1195, %v1194, %v1171
    %vm1197 = vcmask 23552
    %v1198 = vsel %vm1197, %v1196, %v1175
    %vm1199 = vcmask 31744
    %v1200 = vsel %vm1199, %v1198, %v1179
    %vm1201 = vcmask 39936
    %v1202 = vsel %vm1201, %v1200, %v1183
    %vm1203 = vcmask 48128
    %v1204 = vsel %vm1203, %v1202, %v1187
    %vm1205 = vcmask 56320
    %v1206 = vsel %vm1205, %v1204, %v1191
    %vm1207 = vcmask 58368
    %v1208 = vsel %vm1207, %v1206, -inf
    %1209 = vmax.xlane.f32.xlu0 %v1208
    %v1210 = vpop.xlane.xlu0 %1209
    %v1211 = vsub.f32 %v1206, %v1210
    %v1212 = vmul.f32 %v1211, 1.442695
    %v1213 = vpow.pop %v1212
    %v1214 = vsel %vm1207, %v1213, 0.0
    %1215 = vadd.xlane.f32.xlu0 %v1214
    %v1216 = vpop.xlane.xlu0 %1215
    %v1217 = vrcp.pop %v1216
    %v1218 = vmul.f32 %v1213, %v1217
    %1219 = vst.msk [vmem:[#allocation4] sm:$0x3] %vm1207, %v1218
    %1221 = vset.pattern.permute.xlu0 0
    %1222 = vperm.xlu0 %1221, %v1218
    %v1223 = vpop.permute.xlu0 %1222
    %v1225 = vmul.f32 %v1223, %v354
    %v1226 = vadd.f32 %v1225, 0.0
    %1227 = vset.pattern.permute.xlu0 1
    %1228 = vperm.xlu0 %1227, %v1218
    %v1229 = vpop.permute.xlu0 %1228
    %v1231 = vmul.f32 %v1229, %v452
    %v1232 = vadd.f32 %v1226, %v1231
    %1233 = vset.pattern.permute.xlu0 2
    %1234 = vperm.xlu0 %1233, %v1218
    %v1235 = vpop.permute.xlu0 %1234
    %v1237 = vmul.f32 %v1235, %v550
    %v1238 = vadd.f32 %v1232, %v1237
    %1239 = vset.pattern.permute.xlu0 3
    %1240 = vperm.xlu0 %1239, %v1218
    %v1241 = vpop.permute.xlu0 %1240
    %v1243 = vmul.f32 %v1241, %v648
    %v1244 = vadd.f32 %v1238, %v1243
    %1245 = vset.pattern.permute.xlu0 4
    %1246 = vperm.xlu0 %1245, %v1218
    %v1247 = vpop.permute.xlu0 %1246
    %v1249 = vmul.f32 %v1247, %v739
    %v1250 = vadd.f32 %v1244, %v1249
    %1251 = vset.pattern.permute.xlu0 5
    %1252 = vperm.xlu0 %1251, %v1218
    %v1253 = vpop.permute.xlu0 %1252
    %v1255 = vmul.f32 %v1253, %v838
    %v1256 = vadd.f32 %v1250, %v1255
    %1257 = vset.pattern.permute.xlu0 6
    %1258 = vperm.xlu0 %1257, %v1218
    %v1259 = vpop.permute.xlu0 %1258
    %v1261 = vmul.f32 %v1259, %v937
    %v1262 = vadd.f32 %v1256, %v1261
    %1263 = vset.pattern.permute.xlu0 7
    %1264 = vperm.xlu0 %1263, %v1218
    %v1265 = vpop.permute.xlu0 %1264
    %v1267 = vmul.f32 %v1265, %v1036
    %v1268 = vadd.f32 %v1262, %v1267
    %v1269 = vsel %vm63, %v1268, %v1036
    %v1270 = vlaneseq
    %v1271 = vshrl.u32 %v1270, 7
    %v1272 = vsub.s32 0, %v1271
    %v1273 = vrot.slane %v51, %v1272
    %v1275 = vsel %vm244, %v1269, 0
    %1277 = vmatprep.subr.mxu0 0.0
    %1278 = vmatpush1.msra.mxu0 0.0
    %1279 = vmatprep.subr.mxu0 0.0
    %1280 = vmatpush1.msra.mxu0 0.0
    %1281 = vmatprep.subr.mxu0 0.0
    %1282 = vmatpush1.msra.mxu0 0.0
    %1283 = vmatprep.subr.mxu0 0.0
    %1284 = vmatpush1.msra.mxu0 0.0
    %1285 = vmatprep.subr.mxu0 0.0
    %1286 = vmatpush1.msra.mxu0 0.0
    %1287 = vmatprep.subr.mxu0 0.0
    %1288 = vmatpush1.msra.mxu0 0.0
    %1289 = vmatprep.subr.mxu0 0.0
    %1290 = vmatpush1.msra.mxu0 0.0
    %1291 = vmatprep.subr.mxu0 0.0
    %1292 = vmatpush1.msra.mxu0 0.0
    %1293 = vmatprep.subr.mxu0 0.0
    %1294 = vmatpush1.msra.mxu0 %v50
    %1295 = vmatprep.subr.mxu0 0.0
    %1296 = vmatpush1.msra.mxu0 %v49
    %1297 = vmatprep.subr.mxu0 0.0
    %1298 = vmatpush1.msra.mxu0 %v48
    %1299 = vmatprep.subr.mxu0 0.0
    %1300 = vmatpush1.msra.mxu0 %v47
    %1301 = vmatprep.subr.mxu0 0.0
    %1302 = vmatpush1.msra.mxu0 %v46
    %1303 = vmatprep.subr.mxu0 0.0
    %1304 = vmatpush1.msra.mxu0 %v45
    %1305 = vmatprep.subr.mxu0 0.0
    %1306 = vmatpush1.msra.mxu0 %v44
    %1307 = vmatprep.subr.mxu0 0.0
    %1308 = vmatpush1.msra.mxu0 %v43
    %1309 = vmatprep.subr.mxu0 0.0
    %1310 = vmatpush2.msra.mxu0 0.0
    %1311 = vmatprep.subr.mxu0 0.0
    %1312 = vmatpush2.msra.mxu0 0.0
    %1313 = vmatprep.subr.mxu0 0.0
    %1314 = vmatpush2.msra.mxu0 0.0
    %1315 = vmatprep.subr.mxu0 0.0
    %1316 = vmatpush2.msra.mxu0 0.0
    %1317 = vmatprep.subr.mxu0 0.0
    %1318 = vmatpush2.msra.mxu0 0.0
    %1319 = vmatprep.subr.mxu0 0.0
    %1320 = vmatpush2.msra.mxu0 0.0
    %1321 = vmatprep.subr.mxu0 0.0
    %1322 = vmatpush2.msra.mxu0 0.0
    %1323 = vmatprep.subr.mxu0 0.0
    %1324 = vmatpush2.msra.mxu0 0.0
    %1325 = vmatprep.subr.mxu0 0.0
    %1326 = vmatpush2.msra.mxu0 0.0
    %1327 = vmatprep.subr.mxu0 0.0
    %1328 = vmatpush2.msra.mxu0 0.0
    %1329 = vmatprep.subr.mxu0 0.0
    %1330 = vmatpush2.msra.mxu0 0.0
    %1331 = vmatprep.subr.mxu0 0.0
    %1332 = vmatpush2.msra.mxu0 0.0
    %1333 = vmatprep.subr.mxu0 0.0
    %1334 = vmatpush2.msra.mxu0 0.0
    %1335 = vmatprep.subr.mxu0 0.0
    %1336 = vmatpush2.msra.mxu0 0.0
    %1337 = vmatprep.subr.mxu0 0.0
    %1338 = vmatpush2.msra.mxu0 0.0
    %1339 = vmatprep.subr.mxu0 0.0
    %1340 = vmatpush2.msra.mxu0 0.0
    %1341 = vmatprep.mubr.f32.mxu0 0.0
    %1342 = vmatmul.mubr.f32.gmra.mxu0 %v1275
    %v1343 = vpop.f32.mrf.mxu0
    %v1344 = vadd.f32 %v1273, %v1343
    %v1345 = vpop.f32.mrf.mxu0
    %1346 = vdwg.mxu0
    %v1347 = vmax.f32 %v1344, 0.0
    %v1348 = vlaneseq
    %v1349 = vshrl.u32 %v1348, 7
    %v1350 = vsub.s32 0, %v1349
    %v1351 = vrot.slane %v56, %v1350
    %v1353 = vsel %vm63, %v1347, 0
    %1355 = vmatprep.subr.mxu0 0.0
    %1356 = vmatpush1.msra.mxu0 0.0
    %1357 = vmatprep.subr.mxu0 0.0
    %1358 = vmatpush1.msra.mxu0 0.0
    %1359 = vmatprep.subr.mxu0 0.0
    %1360 = vmatpush1.msra.mxu0 0.0
    %1361 = vmatprep.subr.mxu0 0.0
    %1362 = vmatpush1.msra.mxu0 0.0
    %1363 = vmatprep.subr.mxu0 0.0
    %1364 = vmatpush1.msra.mxu0 0.0
    %1365 = vmatprep.subr.mxu0 0.0
    %1366 = vmatpush1.msra.mxu0 0.0
    %1367 = vmatprep.subr.mxu0 0.0
    %1368 = vmatpush1.msra.mxu0 0.0
    %1369 = vmatprep.subr.mxu0 0.0
    %1370 = vmatpush1.msra.mxu0 0.0
    %1371 = vmatprep.subr.mxu0 0.0
    %1372 = vmatpush1.msra.mxu0 0.0
    %1373 = vmatprep.subr.mxu0 0.0
    %1374 = vmatpush1.msra.mxu0 0.0
    %1375 = vmatprep.subr.mxu0 0.0
    %1376 = vmatpush1.msra.mxu0 0.0
    %1377 = vmatprep.subr.mxu0 0.0
    %1378 = vmatpush1.msra.mxu0 0.0
    %1379 = vmatprep.subr.mxu0 0.0
    %1380 = vmatpush1.msra.mxu0 %v55
    %1381 = vmatprep.subr.mxu0 0.0
    %1382 = vmatpush1.msra.mxu0 %v54
    %1383 = vmatprep.subr.mxu0 0.0
    %1384 = vmatpush1.msra.mxu0 %v53
    %1385 = vmatprep.subr.mxu0 0.0
    %1386 = vmatpush1.msra.mxu0 %v52
    %1387 = vmatprep.subr.mxu0 0.0
    %1388 = vmatpush2.msra.mxu0 0.0
    %1389 = vmatprep.subr.mxu0 0.0
    %1390 = vmatpush2.msra.mxu0 0.0
    %1391 = vmatprep.subr.mxu0 0.0
    %1392 = vmatpush2.msra.mxu0 0.0
    %1393 = vmatprep.subr.mxu0 0.0
    %1394 = vmatpush2.msra.mxu0 0.0
    %1395 = vmatprep.subr.mxu0 0.0
    %1396 = vmatpush2.msra.mxu0 0.0
    %1397 = vmatprep.subr.mxu0 0.0
    %1398 = vmatpush2.msra.mxu0 0.0
    %1399 = vmatprep.subr.mxu0 0.0
    %1400 = vmatpush2.msra.mxu0 0.0
    %1401 = vmatprep.subr.mxu0 0.0
    %1402 = vmatpush2.msra.mxu0 0.0
    %1403 = vmatprep.subr.mxu0 0.0
    %1404 = vmatpush2.msra.mxu0 0.0
    %1405 = vmatprep.subr.mxu0 0.0
    %1406 = vmatpush2.msra.mxu0 0.0
    %1407 = vmatprep.subr.mxu0 0.0
    %1408 = vmatpush2.msra.mxu0 0.0
    %1409 = vmatprep.subr.mxu0 0.0
    %1410 = vmatpush2.msra.mxu0 0.0
    %1411 = vmatprep.subr.mxu0 0.0
    %1412 = vmatpush2.msra.mxu0 0.0
    %1413 = vmatprep.subr.mxu0 0.0
    %1414 = vmatpush2.msra.mxu0 0.0
    %1415 = vmatprep.subr.mxu0 0.0
    %1416 = vmatpush2.msra.mxu0 0.0
    %1417 = vmatprep.subr.mxu0 0.0
    %1418 = vmatpush2.msra.mxu0 0.0
    %1419 = vmatprep.mubr.f32.mxu0 0.0
    %1420 = vmatmul.mubr.f32.gmra.mxu0 %v1353
    %v1421 = vpop.f32.mrf.mxu0
    %v1422 = vadd.f32 %v1351, %v1421
    %v1423 = vpop.f32.mrf.mxu0
    %1424 = vdwg.mxu0
    %vm1425 = vcmask 17408
    %1426 = vst.msk [vmem:[#allocation2] sm:$0x3] %vm1425, %v1422
    // Predicated region
    $region14: #{forward.1} parent=1 // pred_check
      _
    $region15: #{forward.1} parent=1 // pred_check_branch
      %1428 = sbr.rel (0) target = $region17
    $region16: #{forward.1} parent=1 // pred_region
      %s1430 = ssub.s32 32, 32
      %1431 = vsyncadd [#allocation3], %s1430
      %s1433 = sshll.u32 [#allocation2], 4
      %s1434 = int_to_ptr.vmem [resolvable:$true] %s1433
      %1436 = dma.vmem_to_hbm [thread:$0]  %s1434, 32, %s3, [#allocation3]
    $region17: #{forward.1} parent=1 // pred_fallthru
      _
    // Predicated region
    $region18: #{forward.1} parent=1 // pred_check
      _
    $region19: #{forward.1} parent=1 // pred_check_branch
      %1438 = sbr.rel (0) target = $region21
    $region20: #{forward.1} parent=1 // pred_region
      %s1440 = ssub.s32 32, 32
      %1441 = vsyncadd [#allocation5], %s1440
      %s1443 = sshll.u32 [#allocation4], 4
      %s1444 = int_to_ptr.vmem [resolvable:$true] %s1443
      %1446 = dma.vmem_to_hbm [thread:$0]  %s1444, 32, %s4, [#allocation5]
    $region21: #{forward.1} parent=1 // pred_fallthru
      _
    // Predicated region
    $region22: #{forward.1} parent=1 // pred_check
      _
    $region23: #{forward.1} parent=1 // pred_check_branch
      %1448 = sbr.rel (0) target = $region25
    $region24: #{forward.1} parent=1 // pred_region
      %1449 = dma.done [#allocation3], 32
    $region25: #{forward.1} parent=1 // pred_fallthru
      _
    // Predicated region
    $region26: #{forward.1} parent=1 // pred_check
      _
    $region27: #{forward.1} parent=1 // pred_check_branch
      %1451 = sbr.rel (0) target = $region29
    $region28: #{forward.1} parent=1 // pred_region
      %1452 = dma.done [#allocation5], 32
    $region29: #{forward.1} parent=1 // pred_fallthru
      _
    %1453 = vsyncpa [#allocation3], 1
    %1454 = vsyncpa [#allocation5], 1

</llo_original>
